<compile_context>
chip_gen: v6e
topology: v6e:2x2x1
jax: 0.10.0
libtpu: 0.0.40
codegen_flags: <defaults>
</compile_context>

<pallas_src>
import jax
import jax.numpy as jnp
from jax import lax
from jax.experimental import pallas as pl
from jax.experimental.pallas import tpu as pltpu
import numpy as np

EPS = 1e-5      # config.transformer_params['embedding']['epsilon']
NBUF = 8        # number of gather DMAs kept in flight


def _embed_ln_kernel(ids_ref, tok_hbm, pos_ref, gamma_ref, beta_ref, o_ref,
                     gathered, sems):
    # ids_ref:   (B, S) int32 token ids in SMEM (scalar prefetch)
    # tok_hbm:   (V, D) token-embedding table, raw HBM ref (memory_space=pl.ANY)
    # pos_ref:   (T, D) positional rows for this sequence tile (VMEM, auto-pipelined)
    # gamma_ref, beta_ref: (1, D) LayerNorm affine params (resident VMEM blocks)
    # o_ref:     (T, D) output tile (batch dim squeezed by the BlockSpec)
    # gathered:  (T, D) VMEM scratch for the gathered token rows
    # sems:      (NBUF,) DMA semaphore ring
    b = pl.program_id(0)
    st = pl.program_id(1)
    T = gathered.shape[0]
    base = st * T

    def start_row(t):
        # One row-gather DMA: HBM token row ids[b, base+t] -> VMEM scratch row t.
        tid = ids_ref[b, base + t]
        pltpu.make_async_copy(tok_hbm.at[tid], gathered.at[t],
                              sems.at[t % NBUF]).start()

    # Prime up to NBUF gather DMAs (static unroll).
    for t in range(min(NBUF, T)):
        start_row(t)

    @pl.loop(0, T)
    def _(t):
        # Wait for row t (wait only needs matching shape + the right semaphore slot),
        # then reuse that slot to launch the gather for row t + NBUF.
        pltpu.make_async_copy(tok_hbm.at[0], gathered.at[t],
                              sems.at[t % NBUF]).wait()

        @pl.when(t + NBUF < T)
        def _():
            start_row(t + NBUF)

    # All T rows are now in VMEM: add positional rows and LayerNorm the whole (T, D) slab.
    x = gathered[...].astype(jnp.float32) + pos_ref[...].astype(jnp.float32)

    mean = jnp.mean(x, axis=-1, keepdims=True)
    xc = x - mean
    var = jnp.mean(xc * xc, axis=-1, keepdims=True)
    inv = lax.rsqrt(var + EPS)
    y = xc * inv * gamma_ref[...].astype(jnp.float32) + beta_ref[...].astype(jnp.float32)

    o_ref[...] = y.astype(o_ref.dtype)


def _choose_seq_tile(S, max_tile=256):
    """Largest divisor of S that is <= max_tile, preferring multiples of 8 (sublane-dense)."""
    divs = [t for t in range(1, min(S, max_tile) + 1) if S % t == 0]
    mult8 = [t for t in divs if t % 8 == 0]
    return max(mult8) if mult8 else max(divs)


def embedding_forward(token_ids, tok_table, pos_table, gamma, beta, *, max_seq_tile=256):
    """token_ids: (B, S) int32; tok_table: (V, D); pos_table: (P, D); gamma/beta: (1, D)."""
    B, S = token_ids.shape
    V, D = tok_table.shape
    P, _ = pos_table.shape
    assert S <= P, "sequence length exceeds max_positional_embeddings"
    # Token ids must be in-range [0, V); out-of-range ids would issue an OOB gather DMA
    # (same undefined behaviour as nn.Embedding with a bad index).

    T = _choose_seq_tile(S, max_seq_tile)   # tokens per grid step

    grid_spec = pltpu.PrefetchScalarGridSpec(
        num_scalar_prefetch=1,              # token_ids -> SMEM, readable inside the kernel
        grid=(B, S // T),
        in_specs=[
            # Token table stays in HBM; rows are gathered with manual DMAs.
            pl.BlockSpec(memory_space=pl.ANY),
            # Positional rows for this seq tile: one contiguous (T, D) DMA per step.
            pl.BlockSpec((T, D), lambda b, st, ids: (st, 0)),
            # LayerNorm affine params: resident (same block every step).
            pl.BlockSpec((1, D), lambda b, st, ids: (0, 0)),
            pl.BlockSpec((1, D), lambda b, st, ids: (0, 0)),
        ],
        # Sublane/lane-dense (T, D) output tiles (batch dim squeezed).
        out_specs=pl.BlockSpec((None, T, D), lambda b, st, ids: (b, st, 0)),
        scratch_shapes=[
            pltpu.VMEM((T, D), tok_table.dtype),     # gathered token rows
            pltpu.SemaphoreType.DMA((NBUF,)),        # gather-DMA semaphore ring
        ],
    )

    return pl.pallas_call(
        _embed_ln_kernel,
        out_shape=jax.ShapeDtypeStruct((B, S, D), jnp.float32),
        grid_spec=grid_spec,
        compiler_params=pltpu.CompilerParams(
            # No carried state across either axis -> both parallel (v7x megacore sharding).
            dimension_semantics=("parallel", "parallel")),
    )(token_ids, tok_table, pos_table, gamma, beta)


def embedding_reference(token_ids, tok_table, pos_table, gamma, beta):
    """Pure-JAX reference matching the PyTorch forward."""
    B, S = token_ids.shape
    pos_ids = jnp.arange(S, dtype=jnp.int32)[None, :]          # (1, S)
    tkn = tok_table[token_ids]                                  # (B, S, D)
    pos = pos_table[pos_ids]                                    # (1, S, D)
    x = tkn + pos
    mean = jnp.mean(x, axis=-1, keepdims=True)
    var = jnp.mean((x - mean) ** 2, axis=-1, keepdims=True)
    y = (x - mean) / jnp.sqrt(var + EPS)
    return y * gamma[0] + beta[0]


if __name__ == "__main__":
    # Small config: vocab_size=50, max_positional_embeddings=16, d_model=32
    B, S, V, P, D = 2, 8, 50, 16, 32

    key = jax.random.PRNGKey(0)
    k_ids, k_tok, k_pos, k_g, k_b = jax.random.split(key, 5)

    token_ids = jax.random.randint(k_ids, (B, S), 0, V, dtype=jnp.int32)
    tok_table = jax.random.normal(k_tok, (V, D), dtype=jnp.float32)
    pos_table = jax.random.normal(k_pos, (P, D), dtype=jnp.float32)
    # PyTorch default LayerNorm params are ones/zeros; perturb so scale/shift is exercised.
    gamma = (jnp.ones((1, D), jnp.float32)
             + 0.1 * jax.random.normal(k_g, (1, D), dtype=jnp.float32))
    beta = 0.1 * jax.random.normal(k_b, (1, D), dtype=jnp.float32)

    out = embedding_forward(token_ids, tok_table, pos_table, gamma, beta)
    out = jax.block_until_ready(out)

    ref = embedding_reference(token_ids, tok_table, pos_table, gamma, beta)
    np.testing.assert_allclose(np.asarray(out), np.asarray(ref), rtol=1e-5, atol=1e-5)

    print("KERNEL_OK")
</pallas_src>

<mosaic_0001>
module attributes {stable_mosaic.version = 11 : i64} {
  func.func @_embed_ln_kernel(%arg0: i32, %arg1: i32, %arg2: memref<2x8xi32, #tpu.memory_space<smem>>, %arg3: memref<50x32xf32, #tpu.memory_space<any>>, %arg4: memref<8x32xf32, #tpu.memory_space<vmem>>, %arg5: memref<1x32xf32, #tpu.memory_space<vmem>>, %arg6: memref<1x32xf32, #tpu.memory_space<vmem>>, %arg7: memref<1x8x32xf32, #tpu.memory_space<vmem>>, %arg8: memref<8x32xf32, #tpu.memory_space<vmem>>, %arg9: memref<8x!tpu.dma_semaphore, #tpu.memory_space<semaphore_mem>>) attributes {dimension_semantics = [#tpu.dimension_semantics<parallel>, #tpu.dimension_semantics<parallel>], iteration_bounds = array<i64: 2, 1>, scalar_prefetch = 1 : i64, scratch_operands = 2 : i64, tpu.core_type = #tpu.core_type<tc>, window_params = [{}, {transform_indices = @transform_1, window_bounds = array<i64: 8, 32>}, {pipeline_mode = #tpu.pipeline_mode<synchronous>, transform_indices = @transform_2, window_bounds = array<i64: 1, 32>}, {pipeline_mode = #tpu.pipeline_mode<synchronous>, transform_indices = @transform_3, window_bounds = array<i64: 1, 32>}, {transform_indices = @transform_4, window_bounds = array<i64: 1, 8, 32>}]} {
    %c8_i32 = arith.constant 8 : i32
    %0 = arith.muli %arg1, %c8_i32 : i32
    %c0_i32 = arith.constant 0 : i32
    %1 = arith.addi %0, %c0_i32 : i32
    %2 = arith.index_cast %arg0 : i32 to index
    %3 = arith.index_cast %1 : i32 to index
    %4 = memref.load %arg2[%2, %3] : memref<2x8xi32, #tpu.memory_space<smem>>
    %c0_i32_0 = arith.constant 0 : i32
    %c0_i32_1 = arith.constant 0 : i32
    %c0_i32_2 = arith.constant 0 : i32
    %5 = tpu.memref_slice %arg3[%4, %c0_i32_2] : memref<50x32xf32, #tpu.memory_space<any>> -> memref<1x32xf32, #tpu.memory_space<any>>
    %6 = tpu.memref_squeeze %5 : memref<1x32xf32, #tpu.memory_space<any>> -> memref<32xf32, #tpu.memory_space<any>>
    %c0_i32_3 = arith.constant 0 : i32
    %7 = tpu.memref_slice %arg8[%c0_i32_0, %c0_i32_3] : memref<8x32xf32, #tpu.memory_space<vmem>> -> memref<1x32xf32, #tpu.memory_space<vmem>>
    %8 = tpu.memref_squeeze %7 : memref<1x32xf32, #tpu.memory_space<vmem>> -> memref<32xf32, #tpu.memory_space<vmem>>
    %9 = tpu.memref_slice %arg9[%c0_i32_1] : memref<8x!tpu.dma_semaphore, #tpu.memory_space<semaphore_mem>> -> memref<1x!tpu.dma_semaphore, #tpu.memory_space<semaphore_mem>>
    %10 = tpu.memref_squeeze %9 : memref<1x!tpu.dma_semaphore, #tpu.memory_space<semaphore_mem>> -> memref<!tpu.dma_semaphore, #tpu.memory_space<semaphore_mem>>
    tpu.enqueue_dma source(%6 : memref<32xf32, #tpu.memory_space<any>>) target(%8 : memref<32xf32, #tpu.memory_space<vmem>>) target_semaphore(%10 : memref<!tpu.dma_semaphore, #tpu.memory_space<semaphore_mem>>)
    %c1_i32 = arith.constant 1 : i32
    %11 = arith.addi %0, %c1_i32 : i32
    %12 = arith.index_cast %arg0 : i32 to index
    %13 = arith.index_cast %11 : i32 to index
    %14 = memref.load %arg2[%12, %13] : memref<2x8xi32, #tpu.memory_space<smem>>
    %c1_i32_4 = arith.constant 1 : i32
    %c1_i32_5 = arith.constant 1 : i32
    %c0_i32_6 = arith.constant 0 : i32
    %15 = tpu.memref_slice %arg3[%14, %c0_i32_6] : memref<50x32xf32, #tpu.memory_space<any>> -> memref<1x32xf32, #tpu.memory_space<any>>
    %16 = tpu.memref_squeeze %15 : memref<1x32xf32, #tpu.memory_space<any>> -> memref<32xf32, #tpu.memory_space<any>>
    %c0_i32_7 = arith.constant 0 : i32
    %17 = tpu.memref_slice %arg8[%c1_i32_4, %c0_i32_7] : memref<8x32xf32, #tpu.memory_space<vmem>> -> memref<1x32xf32, #tpu.memory_space<vmem>>
    %18 = tpu.memref_squeeze %17 : memref<1x32xf32, #tpu.memory_space<vmem>> -> memref<32xf32, #tpu.memory_space<vmem>>
    %19 = tpu.memref_slice %arg9[%c1_i32_5] : memref<8x!tpu.dma_semaphore, #tpu.memory_space<semaphore_mem>> -> memref<1x!tpu.dma_semaphore, #tpu.memory_space<semaphore_mem>>
    %20 = tpu.memref_squeeze %19 : memref<1x!tpu.dma_semaphore, #tpu.memory_space<semaphore_mem>> -> memref<!tpu.dma_semaphore, #tpu.memory_space<semaphore_mem>>
    tpu.enqueue_dma source(%16 : memref<32xf32, #tpu.memory_space<any>>) target(%18 : memref<32xf32, #tpu.memory_space<vmem>>) target_semaphore(%20 : memref<!tpu.dma_semaphore, #tpu.memory_space<semaphore_mem>>)
    %c2_i32 = arith.constant 2 : i32
    %21 = arith.addi %0, %c2_i32 : i32
    %22 = arith.index_cast %arg0 : i32 to index
    %23 = arith.index_cast %21 : i32 to index
    %24 = memref.load %arg2[%22, %23] : memref<2x8xi32, #tpu.memory_space<smem>>
    %c2_i32_8 = arith.constant 2 : i32
    %c2_i32_9 = arith.constant 2 : i32
    %c0_i32_10 = arith.constant 0 : i32
    %25 = tpu.memref_slice %arg3[%24, %c0_i32_10] : memref<50x32xf32, #tpu.memory_space<any>> -> memref<1x32xf32, #tpu.memory_space<any>>
    %26 = tpu.memref_squeeze %25 : memref<1x32xf32, #tpu.memory_space<any>> -> memref<32xf32, #tpu.memory_space<any>>
    %c0_i32_11 = arith.constant 0 : i32
    %27 = tpu.memref_slice %arg8[%c2_i32_8, %c0_i32_11] : memref<8x32xf32, #tpu.memory_space<vmem>> -> memref<1x32xf32, #tpu.memory_space<vmem>>
    %28 = tpu.memref_squeeze %27 : memref<1x32xf32, #tpu.memory_space<vmem>> -> memref<32xf32, #tpu.memory_space<vmem>>
    %29 = tpu.memref_slice %arg9[%c2_i32_9] : memref<8x!tpu.dma_semaphore, #tpu.memory_space<semaphore_mem>> -> memref<1x!tpu.dma_semaphore, #tpu.memory_space<semaphore_mem>>
    %30 = tpu.memref_squeeze %29 : memref<1x!tpu.dma_semaphore, #tpu.memory_space<semaphore_mem>> -> memref<!tpu.dma_semaphore, #tpu.memory_space<semaphore_mem>>
    tpu.enqueue_dma source(%26 : memref<32xf32, #tpu.memory_space<any>>) target(%28 : memref<32xf32, #tpu.memory_space<vmem>>) target_semaphore(%30 : memref<!tpu.dma_semaphore, #tpu.memory_space<semaphore_mem>>)
    %c3_i32 = arith.constant 3 : i32
    %31 = arith.addi %0, %c3_i32 : i32
    %32 = arith.index_cast %arg0 : i32 to index
    %33 = arith.index_cast %31 : i32 to index
    %34 = memref.load %arg2[%32, %33] : memref<2x8xi32, #tpu.memory_space<smem>>
    %c3_i32_12 = arith.constant 3 : i32
    %c3_i32_13 = arith.constant 3 : i32
    %c0_i32_14 = arith.constant 0 : i32
    %35 = tpu.memref_slice %arg3[%34, %c0_i32_14] : memref<50x32xf32, #tpu.memory_space<any>> -> memref<1x32xf32, #tpu.memory_space<any>>
    %36 = tpu.memref_squeeze %35 : memref<1x32xf32, #tpu.memory_space<any>> -> memref<32xf32, #tpu.memory_space<any>>
    %c0_i32_15 = arith.constant 0 : i32
    %37 = tpu.memref_slice %arg8[%c3_i32_12, %c0_i32_15] : memref<8x32xf32, #tpu.memory_space<vmem>> -> memref<1x32xf32, #tpu.memory_space<vmem>>
    %38 = tpu.memref_squeeze %37 : memref<1x32xf32, #tpu.memory_space<vmem>> -> memref<32xf32, #tpu.memory_space<vmem>>
    %39 = tpu.memref_slice %arg9[%c3_i32_13] : memref<8x!tpu.dma_semaphore, #tpu.memory_space<semaphore_mem>> -> memref<1x!tpu.dma_semaphore, #tpu.memory_space<semaphore_mem>>
    %40 = tpu.memref_squeeze %39 : memref<1x!tpu.dma_semaphore, #tpu.memory_space<semaphore_mem>> -> memref<!tpu.dma_semaphore, #tpu.memory_space<semaphore_mem>>
    tpu.enqueue_dma source(%36 : memref<32xf32, #tpu.memory_space<any>>) target(%38 : memref<32xf32, #tpu.memory_space<vmem>>) target_semaphore(%40 : memref<!tpu.dma_semaphore, #tpu.memory_space<semaphore_mem>>)
    %c4_i32 = arith.constant 4 : i32
    %41 = arith.addi %0, %c4_i32 : i32
    %42 = arith.index_cast %arg0 : i32 to index
    %43 = arith.index_cast %41 : i32 to index
    %44 = memref.load %arg2[%42, %43] : memref<2x8xi32, #tpu.memory_space<smem>>
    %c4_i32_16 = arith.constant 4 : i32
    %c4_i32_17 = arith.constant 4 : i32
    %c0_i32_18 = arith.constant 0 : i32
    %45 = tpu.memref_slice %arg3[%44, %c0_i32_18] : memref<50x32xf32, #tpu.memory_space<any>> -> memref<1x32xf32, #tpu.memory_space<any>>
    %46 = tpu.memref_squeeze %45 : memref<1x32xf32, #tpu.memory_space<any>> -> memref<32xf32, #tpu.memory_space<any>>
    %c0_i32_19 = arith.constant 0 : i32
    %47 = tpu.memref_slice %arg8[%c4_i32_16, %c0_i32_19] : memref<8x32xf32, #tpu.memory_space<vmem>> -> memref<1x32xf32, #tpu.memory_space<vmem>>
    %48 = tpu.memref_squeeze %47 : memref<1x32xf32, #tpu.memory_space<vmem>> -> memref<32xf32, #tpu.memory_space<vmem>>
    %49 = tpu.memref_slice %arg9[%c4_i32_17] : memref<8x!tpu.dma_semaphore, #tpu.memory_space<semaphore_mem>> -> memref<1x!tpu.dma_semaphore, #tpu.memory_space<semaphore_mem>>
    %50 = tpu.memref_squeeze %49 : memref<1x!tpu.dma_semaphore, #tpu.memory_space<semaphore_mem>> -> memref<!tpu.dma_semaphore, #tpu.memory_space<semaphore_mem>>
    tpu.enqueue_dma source(%46 : memref<32xf32, #tpu.memory_space<any>>) target(%48 : memref<32xf32, #tpu.memory_space<vmem>>) target_semaphore(%50 : memref<!tpu.dma_semaphore, #tpu.memory_space<semaphore_mem>>)
    %c5_i32 = arith.constant 5 : i32
    %51 = arith.addi %0, %c5_i32 : i32
    %52 = arith.index_cast %arg0 : i32 to index
    %53 = arith.index_cast %51 : i32 to index
    %54 = memref.load %arg2[%52, %53] : memref<2x8xi32, #tpu.memory_space<smem>>
    %c5_i32_20 = arith.constant 5 : i32
    %c5_i32_21 = arith.constant 5 : i32
    %c0_i32_22 = arith.constant 0 : i32
    %55 = tpu.memref_slice %arg3[%54, %c0_i32_22] : memref<50x32xf32, #tpu.memory_space<any>> -> memref<1x32xf32, #tpu.memory_space<any>>
    %56 = tpu.memref_squeeze %55 : memref<1x32xf32, #tpu.memory_space<any>> -> memref<32xf32, #tpu.memory_space<any>>
    %c0_i32_23 = arith.constant 0 : i32
    %57 = tpu.memref_slice %arg8[%c5_i32_20, %c0_i32_23] : memref<8x32xf32, #tpu.memory_space<vmem>> -> memref<1x32xf32, #tpu.memory_space<vmem>>
    %58 = tpu.memref_squeeze %57 : memref<1x32xf32, #tpu.memory_space<vmem>> -> memref<32xf32, #tpu.memory_space<vmem>>
    %59 = tpu.memref_slice %arg9[%c5_i32_21] : memref<8x!tpu.dma_semaphore, #tpu.memory_space<semaphore_mem>> -> memref<1x!tpu.dma_semaphore, #tpu.memory_space<semaphore_mem>>
    %60 = tpu.memref_squeeze %59 : memref<1x!tpu.dma_semaphore, #tpu.memory_space<semaphore_mem>> -> memref<!tpu.dma_semaphore, #tpu.memory_space<semaphore_mem>>
    tpu.enqueue_dma source(%56 : memref<32xf32, #tpu.memory_space<any>>) target(%58 : memref<32xf32, #tpu.memory_space<vmem>>) target_semaphore(%60 : memref<!tpu.dma_semaphore, #tpu.memory_space<semaphore_mem>>)
    %c6_i32 = arith.constant 6 : i32
    %61 = arith.addi %0, %c6_i32 : i32
    %62 = arith.index_cast %arg0 : i32 to index
    %63 = arith.index_cast %61 : i32 to index
    %64 = memref.load %arg2[%62, %63] : memref<2x8xi32, #tpu.memory_space<smem>>
    %c6_i32_24 = arith.constant 6 : i32
    %c6_i32_25 = arith.constant 6 : i32
    %c0_i32_26 = arith.constant 0 : i32
    %65 = tpu.memref_slice %arg3[%64, %c0_i32_26] : memref<50x32xf32, #tpu.memory_space<any>> -> memref<1x32xf32, #tpu.memory_space<any>>
    %66 = tpu.memref_squeeze %65 : memref<1x32xf32, #tpu.memory_space<any>> -> memref<32xf32, #tpu.memory_space<any>>
    %c0_i32_27 = arith.constant 0 : i32
    %67 = tpu.memref_slice %arg8[%c6_i32_24, %c0_i32_27] : memref<8x32xf32, #tpu.memory_space<vmem>> -> memref<1x32xf32, #tpu.memory_space<vmem>>
    %68 = tpu.memref_squeeze %67 : memref<1x32xf32, #tpu.memory_space<vmem>> -> memref<32xf32, #tpu.memory_space<vmem>>
    %69 = tpu.memref_slice %arg9[%c6_i32_25] : memref<8x!tpu.dma_semaphore, #tpu.memory_space<semaphore_mem>> -> memref<1x!tpu.dma_semaphore, #tpu.memory_space<semaphore_mem>>
    %70 = tpu.memref_squeeze %69 : memref<1x!tpu.dma_semaphore, #tpu.memory_space<semaphore_mem>> -> memref<!tpu.dma_semaphore, #tpu.memory_space<semaphore_mem>>
    tpu.enqueue_dma source(%66 : memref<32xf32, #tpu.memory_space<any>>) target(%68 : memref<32xf32, #tpu.memory_space<vmem>>) target_semaphore(%70 : memref<!tpu.dma_semaphore, #tpu.memory_space<semaphore_mem>>)
    %c7_i32 = arith.constant 7 : i32
    %71 = arith.addi %0, %c7_i32 : i32
    %72 = arith.index_cast %arg0 : i32 to index
    %73 = arith.index_cast %71 : i32 to index
    %74 = memref.load %arg2[%72, %73] : memref<2x8xi32, #tpu.memory_space<smem>>
    %c7_i32_28 = arith.constant 7 : i32
    %c7_i32_29 = arith.constant 7 : i32
    %c0_i32_30 = arith.constant 0 : i32
    %75 = tpu.memref_slice %arg3[%74, %c0_i32_30] : memref<50x32xf32, #tpu.memory_space<any>> -> memref<1x32xf32, #tpu.memory_space<any>>
    %76 = tpu.memref_squeeze %75 : memref<1x32xf32, #tpu.memory_space<any>> -> memref<32xf32, #tpu.memory_space<any>>
    %c0_i32_31 = arith.constant 0 : i32
    %77 = tpu.memref_slice %arg8[%c7_i32_28, %c0_i32_31] : memref<8x32xf32, #tpu.memory_space<vmem>> -> memref<1x32xf32, #tpu.memory_space<vmem>>
    %78 = tpu.memref_squeeze %77 : memref<1x32xf32, #tpu.memory_space<vmem>> -> memref<32xf32, #tpu.memory_space<vmem>>
    %79 = tpu.memref_slice %arg9[%c7_i32_29] : memref<8x!tpu.dma_semaphore, #tpu.memory_space<semaphore_mem>> -> memref<1x!tpu.dma_semaphore, #tpu.memory_space<semaphore_mem>>
    %80 = tpu.memref_squeeze %79 : memref<1x!tpu.dma_semaphore, #tpu.memory_space<semaphore_mem>> -> memref<!tpu.dma_semaphore, #tpu.memory_space<semaphore_mem>>
    tpu.enqueue_dma source(%76 : memref<32xf32, #tpu.memory_space<any>>) target(%78 : memref<32xf32, #tpu.memory_space<vmem>>) target_semaphore(%80 : memref<!tpu.dma_semaphore, #tpu.memory_space<semaphore_mem>>)
    %c0_i32_32 = arith.constant 0 : i32
    %c8_i32_33 = arith.constant 8 : i32
    %81 = arith.addi %c0_i32_32, %c8_i32_33 : i32
    %c1_i32_34 = arith.constant 1 : i32
    scf.for %arg10 = %c0_i32_32 to %81 step %c1_i32_34  : i32 {
      %c1_i32_50 = arith.constant 1 : i32
      %110 = arith.muli %arg10, %c1_i32_50 : i32
      %c0_i32_51 = arith.constant 0 : i32
      %111 = arith.addi %c0_i32_51, %110 : i32
      %c8_i32_52 = arith.constant 8 : i32
      %c0_i32_53 = arith.constant 0 : i32
      %112 = arith.cmpi eq, %c8_i32_52, %c0_i32_53 : i32
      %c1_i32_54 = arith.constant 1 : i32
      %113 = arith.select %112, %c1_i32_54, %c8_i32_52 : i32
      %114 = arith.remsi %111, %113 : i32
      %c0_i32_55 = arith.constant 0 : i32
      %115 = arith.cmpi ne, %114, %c0_i32_55 : i32
      %c0_i32_56 = arith.constant 0 : i32
      %116 = arith.cmpi slt, %114, %c0_i32_56 : i32
      %c0_i32_57 = arith.constant 0 : i32
      %117 = arith.cmpi slt, %113, %c0_i32_57 : i32
      %118 = arith.xori %116, %117 : i1
      %119 = arith.andi %118, %115 : i1
      %120 = arith.addi %114, %113 : i32
      %121 = arith.select %119, %120, %114 : i32
      %c0_i32_58 = arith.constant 0 : i32
      %c0_i32_59 = arith.constant 0 : i32
      %122 = tpu.memref_slice %arg3[%c0_i32_58, %c0_i32_59] : memref<50x32xf32, #tpu.memory_space<any>> -> memref<1x32xf32, #tpu.memory_space<any>>
      %123 = tpu.memref_squeeze %122 : memref<1x32xf32, #tpu.memory_space<any>> -> memref<32xf32, #tpu.memory_space<any>>
      %c0_i32_60 = arith.constant 0 : i32
      %124 = tpu.memref_slice %arg8[%111, %c0_i32_60] : memref<8x32xf32, #tpu.memory_space<vmem>> -> memref<1x32xf32, #tpu.memory_space<vmem>>
      %125 = tpu.memref_squeeze %124 : memref<1x32xf32, #tpu.memory_space<vmem>> -> memref<32xf32, #tpu.memory_space<vmem>>
      %126 = tpu.memref_slice %arg9[%121] : memref<8x!tpu.dma_semaphore, #tpu.memory_space<semaphore_mem>> -> memref<1x!tpu.dma_semaphore, #tpu.memory_space<semaphore_mem>>
      %127 = tpu.memref_squeeze %126 : memref<1x!tpu.dma_semaphore, #tpu.memory_space<semaphore_mem>> -> memref<!tpu.dma_semaphore, #tpu.memory_space<semaphore_mem>>
      tpu.wait_dma2 semaphore(%127 : memref<!tpu.dma_semaphore, #tpu.memory_space<semaphore_mem>>) src(%123 : memref<32xf32, #tpu.memory_space<any>>) dst(%125 : memref<32xf32, #tpu.memory_space<vmem>>)
      %c8_i32_61 = arith.constant 8 : i32
      %128 = arith.addi %111, %c8_i32_61 : i32
      %c8_i32_62 = arith.constant 8 : i32
      %129 = arith.cmpi slt, %128, %c8_i32_62 : i32
      %130 = arith.extui %129 : i1 to i32
      %c0_i32_63 = arith.constant 0 : i32
      %131 = arith.cmpi ne, %130, %c0_i32_63 : i32
      scf.if %131 {
        %c8_i32_64 = arith.constant 8 : i32
        %132 = arith.addi %111, %c8_i32_64 : i32
        %133 = arith.addi %0, %132 : i32
        %134 = arith.index_cast %arg0 : i32 to index
        %135 = arith.index_cast %133 : i32 to index
        %136 = memref.load %arg2[%134, %135] : memref<2x8xi32, #tpu.memory_space<smem>>
        %c8_i32_65 = arith.constant 8 : i32
        %c0_i32_66 = arith.constant 0 : i32
        %137 = arith.cmpi eq, %c8_i32_65, %c0_i32_66 : i32
        %c1_i32_67 = arith.constant 1 : i32
        %138 = arith.select %137, %c1_i32_67, %c8_i32_65 : i32
        %139 = arith.remsi %132, %138 : i32
        %c0_i32_68 = arith.constant 0 : i32
        %140 = arith.cmpi ne, %139, %c0_i32_68 : i32
        %c0_i32_69 = arith.constant 0 : i32
        %141 = arith.cmpi slt, %139, %c0_i32_69 : i32
        %c0_i32_70 = arith.constant 0 : i32
        %142 = arith.cmpi slt, %138, %c0_i32_70 : i32
        %143 = arith.xori %141, %142 : i1
        %144 = arith.andi %143, %140 : i1
        %145 = arith.addi %139, %138 : i32
        %146 = arith.select %144, %145, %139 : i32
        %c0_i32_71 = arith.constant 0 : i32
        %147 = tpu.memref_slice %arg3[%136, %c0_i32_71] : memref<50x32xf32, #tpu.memory_space<any>> -> memref<1x32xf32, #tpu.memory_space<any>>
        %148 = tpu.memref_squeeze %147 : memref<1x32xf32, #tpu.memory_space<any>> -> memref<32xf32, #tpu.memory_space<any>>
        %c0_i32_72 = arith.constant 0 : i32
        %149 = tpu.memref_slice %arg8[%132, %c0_i32_72] : memref<8x32xf32, #tpu.memory_space<vmem>> -> memref<1x32xf32, #tpu.memory_space<vmem>>
        %150 = tpu.memref_squeeze %149 : memref<1x32xf32, #tpu.memory_space<vmem>> -> memref<32xf32, #tpu.memory_space<vmem>>
        %151 = tpu.memref_slice %arg9[%146] : memref<8x!tpu.dma_semaphore, #tpu.memory_space<semaphore_mem>> -> memref<1x!tpu.dma_semaphore, #tpu.memory_space<semaphore_mem>>
        %152 = tpu.memref_squeeze %151 : memref<1x!tpu.dma_semaphore, #tpu.memory_space<semaphore_mem>> -> memref<!tpu.dma_semaphore, #tpu.memory_space<semaphore_mem>>
        tpu.enqueue_dma source(%148 : memref<32xf32, #tpu.memory_space<any>>) target(%150 : memref<32xf32, #tpu.memory_space<vmem>>) target_semaphore(%152 : memref<!tpu.dma_semaphore, #tpu.memory_space<semaphore_mem>>)
      } else {
      }
    }
    %c8_i32_35 = arith.constant 8 : i32
    %c0 = arith.constant 0 : index
    %c0_36 = arith.constant 0 : index
    %82 = vector.load %arg8[%c0, %c0_36] : memref<8x32xf32, #tpu.memory_space<vmem>>, vector<8x32xf32>
    %c0_37 = arith.constant 0 : index
    %c0_38 = arith.constant 0 : index
    %83 = vector.load %arg4[%c0_37, %c0_38] : memref<8x32xf32, #tpu.memory_space<vmem>>, vector<8x32xf32>
    %84 = arith.addf %82, %83 : vector<8x32xf32>
    %cst = arith.constant dense<0.000000e+00> : vector<8xf32>
    %85 = vector.multi_reduction <add>, %84, %cst [1] : vector<8x32xf32> to vector<8xf32>
    %86 = vector.shape_cast %85 : vector<8xf32> to vector<8x1xf32>
    %cst_39 = arith.constant 3.200000e+01 : f32
    %87 = vector.broadcast %cst_39 : f32 to vector<8x1xf32>
    %88 = arith.divf %86, %87 : vector<8x1xf32>
    %89 = vector.broadcast %88 : vector<8x1xf32> to vector<8x32xf32>
    %90 = arith.subf %84, %89 : vector<8x32xf32>
    %91 = arith.mulf %90, %90 : vector<8x32xf32>
    %cst_40 = arith.constant dense<0.000000e+00> : vector<8xf32>
    %92 = vector.multi_reduction <add>, %91, %cst_40 [1] : vector<8x32xf32> to vector<8xf32>
    %93 = vector.shape_cast %92 : vector<8xf32> to vector<8x1xf32>
    %cst_41 = arith.constant 3.200000e+01 : f32
    %94 = vector.broadcast %cst_41 : f32 to vector<8x1xf32>
    %95 = arith.divf %93, %94 : vector<8x1xf32>
    %cst_42 = arith.constant 9.99999974E-6 : f32
    %96 = vector.broadcast %cst_42 : f32 to vector<8x1xf32>
    %97 = arith.addf %95, %96 : vector<8x1xf32>
    %98 = math.rsqrt %97 : vector<8x1xf32>
    %99 = vector.broadcast %98 : vector<8x1xf32> to vector<8x32xf32>
    %100 = arith.mulf %90, %99 : vector<8x32xf32>
    %c0_43 = arith.constant 0 : index
    %c0_44 = arith.constant 0 : index
    %101 = vector.load %arg5[%c0_43, %c0_44] : memref<1x32xf32, #tpu.memory_space<vmem>>, vector<1x32xf32>
    %102 = vector.broadcast %101 : vector<1x32xf32> to vector<8x32xf32>
    %103 = arith.mulf %100, %102 : vector<8x32xf32>
    %c0_45 = arith.constant 0 : index
    %c0_46 = arith.constant 0 : index
    %104 = vector.load %arg6[%c0_45, %c0_46] : memref<1x32xf32, #tpu.memory_space<vmem>>, vector<1x32xf32>
    %105 = vector.broadcast %104 : vector<1x32xf32> to vector<8x32xf32>
    %106 = arith.addf %103, %105 : vector<8x32xf32>
    %c0_47 = arith.constant 0 : index
    %c0_48 = arith.constant 0 : index
    %c0_49 = arith.constant 0 : index
    %107 = vector.load %arg7[%c0_47, %c0_48, %c0_49] : memref<1x8x32xf32, #tpu.memory_space<vmem>>, vector<1x8x32xf32>
    %108 = vector.shape_cast %107 : vector<1x8x32xf32> to vector<8x32xf32>
    %109 = vector.shape_cast %106 : vector<8x32xf32> to vector<1x8x32xf32>
    tpu.vector_store %arg7[%c0_47, %c0_48, %c0_49], %109 {strides = array<i32>} : memref<1x8x32xf32, #tpu.memory_space<vmem>>, vector<1x8x32xf32>,
    return
  }
  func.func @transform_1(%arg0: i32, %arg1: i32, %arg2: memref<2x8xi32, #tpu.memory_space<smem>>) -> (i32, i32) {
    %c0_i32 = arith.constant 0 : i32
    %c0_i32_0 = arith.constant 0 : i32
    return %arg1, %c0_i32 : i32, i32
  }
  func.func @transform_2(%arg0: i32, %arg1: i32, %arg2: memref<2x8xi32, #tpu.memory_space<smem>>) -> (i32, i32) {
    %c0_i32 = arith.constant 0 : i32
    %c0_i32_0 = arith.constant 0 : i32
    %c0_i32_1 = arith.constant 0 : i32
    return %c0_i32, %c0_i32_0 : i32, i32
  }
  func.func @transform_3(%arg0: i32, %arg1: i32, %arg2: memref<2x8xi32, #tpu.memory_space<smem>>) -> (i32, i32) {
    %c0_i32 = arith.constant 0 : i32
    %c0_i32_0 = arith.constant 0 : i32
    %c0_i32_1 = arith.constant 0 : i32
    return %c0_i32, %c0_i32_0 : i32, i32
  }
  func.func @transform_4(%arg0: i32, %arg1: i32, %arg2: memref<2x8xi32, #tpu.memory_space<smem>>) -> (i32, i32, i32) {
    %c0_i32 = arith.constant 0 : i32
    %c0_i32_0 = arith.constant 0 : i32
    return %arg0, %arg1, %c0_i32 : i32, i32, i32
  }
}

</mosaic_0001>

<llo_original>
// kernel: tpu_custom_call.1
$region0: #{tpu_custom_call.1}
  #allocation0 [shape = 'u32[]', space=smem, size = 0x4, offset = 0x4, fixed_abs, tag = 'smem constant byte address 0x4 - core index']
  #allocation1 [shape = 'u32[144,128]{1,0:T(1,128)}', space=vmem, size = 0x12000, scoped, tag = 'internal scratch']
  #allocation2 [shape = 'f32[8,32]{1,0:T(8,128)}', space=vmem, size = 0x1000, scoped, tag = 'scratch operand']
  #allocation3 [shape = 's32[8]{0}', space=sflag, size = 0x20, scoped, tag = 'scratch operand']
  #allocation4 [shape = 's32[1]{0}', space=sflag, size = 0x4, scoped, tag = 'scoped memory for tpu_custom_call.1']
  #allocation5 [shape = 'u8[1024]{0}', space=smem, size = 0x400, scoped, tag = 'prefetched SMEM operand 0']
  #allocation8 [shape = 's32[]', space=sflag, size = 0x4, offset = 0, fixed_abs, tag = 'sflag constant byte address 0x0 - dummy sync flag']
  #allocation9 [shape = 's32[]', space=sflag, size = 0x4, offset = 0, fixed_abs, tag = 'sflag constant byte address 0x0 - dummy sync flag']
  #allocation10 [shape = 's32[]', space=sflag, size = 0x4, offset = 0, fixed_abs, tag = 'sflag constant byte address 0x0 - dummy sync flag']
  #allocation11 [shape = 's32[]', space=sflag, size = 0x4, offset = 0, fixed_abs, tag = 'sflag constant byte address 0x0 - dummy sync flag']
  #allocation12 [shape = 's32[]', space=sflag, size = 0x4, offset = 0, fixed_abs, tag = 'sflag constant byte address 0x0 - dummy sync flag']
  #allocation13 [shape = 's32[]', space=sflag, size = 0x4, offset = 0, fixed_abs, tag = 'sflag constant byte address 0x0 - dummy sync flag']
  #allocation14 [shape = 's32[]', space=sflag, size = 0x4, offset = 0, fixed_abs, tag = 'sflag constant byte address 0x0 - dummy sync flag']
  #allocation15 [shape = 's32[]', space=sflag, size = 0x4, offset = 0, fixed_abs, tag = 'sflag constant byte address 0x0 - dummy sync flag']
  #allocation16 [shape = 's32[]', space=sflag, size = 0x4, offset = 0, fixed_abs, tag = 'sflag constant byte address 0x0 - dummy sync flag']
  %s0 = inlined_call_operand.vmem [shape: s32[2,8], index: 0, kind: input, shape index: {}]
  %s1 = inlined_call_operand.vmem [shape: f32[50,32], index: 1, kind: input, shape index: {}]
  %s2 = inlined_call_operand.vmem [shape: f32[16,32], index: 2, kind: input, shape index: {}]
  %s3 = inlined_call_operand.vmem [shape: f32[1,32], index: 3, kind: input, shape index: {}]
  %s4 = inlined_call_operand.vmem [shape: f32[1,32], index: 4, kind: input, shape index: {}]
  %s5 = inlined_call_operand.hbm [shape: f32[2,8,32], index: 5, kind: output, shape index: {}]
  %s6 = sld [smem:[#allocation0]]
  $region326: #{tpu_custom_call.1} parent=0
    _
  %s8 = ssub.s32 1, %s6
  %s9 = scalar_select 0, %s8, %s6
  %s10 = sshll.u32 %s0, 4
  %s11 = int_to_ptr.vmem [resolvable:$true] %s10
  %13 = dma.vmem_to_smem %s11, 32, [#allocation5], [#allocation4]
  %14 = dma.done [#allocation4], 32
  %15 = sfence
  $region1: #{tpu_custom_call.1} parent=0
    #allocation6 [shape = 'u8[8192]{0}', space=vmem, size = 0x2000, scoped, tag = 'output window, operand 0']
    #allocation7 [shape = 's32[2]{0}', space=sflag, size = 0x8, scoped, tag = 'scoped memory for tpu_custom_call.1']
    %16 = vsyncpa [#allocation7], 0
    %s17 = scalar_lea.sflag [#allocation7], 1
    %18 = vsyncpa %s17, 0
    loop: start=0, step=1, limit=4
    $region2: #{tpu_custom_call.1} parent=1 // loop_pre_header
      _
    $region3: #{tpu_custom_call.1} parent=1 // loop_header
      %s20 = sphi 0, %s24
      %p21 = scmp.ge.s32.totalorder %s20, 4
      %s27 = sphi 0, %s39
      %s28 = sphi 0, %s35
      %s29 = sphi 0, %s27
      %s30 = sphi 0, %s28
      %s31 = sphi 0, %s29
      %s32 = sphi 0, %s30
      %s42 = sphi 0, %s44
      %s45 = sphi 0, %s42
      %s46 = sphi 0, %s45
      %s62 = sphi 0, %s46
      %s66 = sphi 0, %s66
      %s68 = sphi 0, %s66
      %s69 = sphi 0, %s68
      %s83 = sphi 0, %s69
      %s87 = sphi 0, %s87
      %s89 = sphi 0, %s87
      %s90 = sphi 0, %s89
      %s104 = sphi 0, %s90
      %s112 = sphi 0, %s114
      %s115 = sphi 0, %s112
      %s116 = sphi 0, %s115
      %s132 = sphi 0, %s116
    $region4: #{tpu_custom_call.1} parent=1 // loop_header_branch
      %23 = sbr.rel (%p21) target = $region8
    $region5: #{tpu_custom_call.1} parent=1 // loop_body
      %s25 = ssub.s32 %s20, 1
      %s26 = ssub.s32 %s20, 2
      %s33 = sadd.s32 1, %s28
      %p34 = scmp.ge.s32.totalorder %s33, 1
      %s35 = scalar_select %p34, 0, %s33
      %s36 = sadd.s32 1, %s27
      %s37 = scalar_select %p34, %s36, %s27
      %p38 = scmp.ge.s32.totalorder %s37, 2
      %s39 = scalar_select %p38, 0, %s37
      %s40 = ssub.s32 %s28, %s35
      %p41 = scmp.eq.s32.totalorder %s40, 0
      %s43 = sadd.s32 %s42, 1
      %s44 = scalar_select %p41, %s42, %s43
      %p47 = pneg %p41
      %p48 = scmp.eq.s32.totalorder %s20, 1
      %p49 = por %p47, %p48
      %p50 = scmp.ne.s32.totalorder %s42, %s45
      %p51 = scmp.eq.s32.totalorder %s20, 0
      %p52 = por %p50, %p51
      %p53 = scmp.ne.s32.totalorder %s42, %s45
      %p54 = scmp.eq.s32.totalorder %s25, 1
      %p55 = por %p53, %p54
      %p56 = scmp.ne.s32.totalorder %s45, %s46
      %p57 = scmp.eq.s32.totalorder %s25, 0
      %p58 = por %p56, %p57
      %p59 = scmp.ne.s32.totalorder %s45, %s46
      %p60 = scmp.eq.s32.totalorder %s26, 1
      %p61 = por %p59, %p60
      %p63 = scmp.ne.s32.totalorder %s46, %s62
      %p64 = scmp.eq.s32.totalorder %s26, 0
      %p65 = por %p63, %p64
      %s67 = sadd.s32 %s66, 1
      %p70 = scmp.eq.s32.totalorder %s20, 1
      %p71 = scmp.ne.s32.totalorder %s66, %s68
      %p72 = scmp.eq.s32.totalorder %s20, 0
      %p73 = por %p71, %p72
      %p74 = scmp.ne.s32.totalorder %s66, %s68
      %p75 = scmp.eq.s32.totalorder %s25, 1
      %p76 = por %p74, %p75
      %p77 = scmp.ne.s32.totalorder %s68, %s69
      %p78 = scmp.eq.s32.totalorder %s25, 0
      %p79 = por %p77, %p78
      %p80 = scmp.ne.s32.totalorder %s68, %s69
      %p81 = scmp.eq.s32.totalorder %s26, 1
      %p82 = por %p80, %p81
      %p84 = scmp.ne.s32.totalorder %s69, %s83
      %p85 = scmp.eq.s32.totalorder %s26, 0
      %p86 = por %p84, %p85
      %s88 = sadd.s32 %s87, 1
      %p91 = scmp.eq.s32.totalorder %s20, 1
      %p92 = scmp.ne.s32.totalorder %s87, %s89
      %p93 = scmp.eq.s32.totalorder %s20, 0
      %p94 = por %p92, %p93
      %p95 = scmp.ne.s32.totalorder %s87, %s89
      %p96 = scmp.eq.s32.totalorder %s25, 1
      %p97 = por %p95, %p96
      %p98 = scmp.ne.s32.totalorder %s89, %s90
      %p99 = scmp.eq.s32.totalorder %s25, 0
      %p100 = por %p98, %p99
      %p101 = scmp.ne.s32.totalorder %s89, %s90
      %p102 = scmp.eq.s32.totalorder %s26, 1
      %p103 = por %p101, %p102
      %p105 = scmp.ne.s32.totalorder %s90, %s104
      %p106 = scmp.eq.s32.totalorder %s26, 0
      %p107 = por %p105, %p106
      %s108 = ssub.s32 %s27, %s39
      %s109 = ssub.s32 %s28, %s35
      %s110 = sor.u32 %s108, %s109
      %p111 = scmp.eq.s32.totalorder %s110, 0
      %s113 = sadd.s32 %s112, 1
      %s114 = scalar_select %p111, %s112, %s113
      %p117 = pneg %p111
      %p118 = scmp.eq.s32.totalorder %s20, 1
      %p119 = por %p117, %p118
      %p120 = scmp.ne.s32.totalorder %s112, %s115
      %p121 = scmp.eq.s32.totalorder %s20, 0
      %p122 = por %p120, %p121
      %p123 = scmp.ne.s32.totalorder %s112, %s115
      %p124 = scmp.eq.s32.totalorder %s25, 1
      %p125 = por %p123, %p124
      %p126 = scmp.ne.s32.totalorder %s115, %s116
      %p127 = scmp.eq.s32.totalorder %s25, 0
      %p128 = por %p126, %p127
      %p129 = scmp.ne.s32.totalorder %s115, %s116
      %p130 = scmp.eq.s32.totalorder %s26, 1
      %p131 = por %p129, %p130
      %p133 = scmp.ne.s32.totalorder %s116, %s132
      %p134 = scmp.eq.s32.totalorder %s26, 0
      %p135 = por %p133, %p134
      %p136 = scmp.le.s32.totalorder 1, %s20
      %p137 = scmp.lt.s32.totalorder %s20, 3
      %p138 = pnand %p136, %p137
      %p139 = pneg %p138
      // Predicated region
      $region9: #{tpu_custom_call.1} parent=5 // pred_check
        _
      $region10: #{tpu_custom_call.1} parent=5 // pred_check_branch
        %141 = sbr.rel (%p138) target = $region12
      $region11: #{tpu_custom_call.1} parent=5 // pred_region
        %s142 = ssub.s32 %s20, 1
        // Predicated region
        $region13: #{tpu_custom_call.1} parent=11 // pred_check
          %p143 = pneg %p58
        $region14: #{tpu_custom_call.1} parent=11 // pred_check_branch
          %145 = sbr.rel (%p143) target = $region16
        $region15: #{tpu_custom_call.1} parent=11 // pred_region
          %p146 = scmp.lt.s32.totalorder %s30, 1
          %s147 = scalar_select %p146, %s30, 1
          %s148 = smul.addr %s147, 8
          %s149 = scalar_lea.vmem %s2, %s148
        $region16: #{tpu_custom_call.1} parent=11 // pred_fallthru
          _
        // Predicated region
        $region17: #{tpu_custom_call.1} parent=11 // pred_check
          %p150 = pneg %p79
        $region18: #{tpu_custom_call.1} parent=11 // pred_check_branch
          %152 = sbr.rel (%p150) target = $region20
        $region19: #{tpu_custom_call.1} parent=11 // pred_region
          _
        $region20: #{tpu_custom_call.1} parent=11 // pred_fallthru
          _
        // Predicated region
        $region21: #{tpu_custom_call.1} parent=11 // pred_check
          %p153 = pneg %p100
        $region22: #{tpu_custom_call.1} parent=11 // pred_check_branch
          %155 = sbr.rel (%p153) target = $region24
        $region23: #{tpu_custom_call.1} parent=11 // pred_region
          _
        $region24: #{tpu_custom_call.1} parent=11 // pred_fallthru
          _
      $region12: #{tpu_custom_call.1} parent=5 // pred_fallthru
        _
      %p156 = scmp.lt.s32.totalorder %s20, 2
      // Predicated region
      $region25: #{tpu_custom_call.1} parent=5 // pred_check
        %p157 = pneg %p156
      $region26: #{tpu_custom_call.1} parent=5 // pred_check_branch
        %159 = sbr.rel (%p157) target = $region28
      $region27: #{tpu_custom_call.1} parent=5 // pred_region
        _
      $region28: #{tpu_custom_call.1} parent=5 // pred_fallthru
        _
      %p160 = scmp.le.s32.totalorder 1, %s20
      %p161 = scmp.lt.s32.totalorder %s20, 3
      %p162 = pnand %p160, %p161
      %p163 = pneg %p162
      // Predicated region
      $region29: #{tpu_custom_call.1} parent=5 // pred_check
        _
      $region30: #{tpu_custom_call.1} parent=5 // pred_check_branch
        %165 = sbr.rel (%p162) target = $region32
      $region31: #{tpu_custom_call.1} parent=5 // pred_region
        %s166 = ssub.s32 %s20, 1
        %p167 = scmp.lt.s32.totalorder %s30, 1
        %s168 = scalar_select %p167, %s30, 1
        %s169 = smul.addr %s168, 8
        %s170 = scalar_lea.vmem %s2, %s169
        %p171 = pneg %p58
        %p172 = pneg %p55
        %p173 = pneg %p79
        %p174 = pneg %p76
        %p175 = pneg %p100
        %p176 = pneg %p97
        %p177 = pneg %p128
        %p178 = pneg %p125
        %s179 = sand.u32 %s115, 1
        %s180 = scalar_lea.sflag [#allocation7], %s179
        %s181 = sand.u32 %s115, 1
        %s182 = smul.addr %s181, 8
        %s183 = scalar_lea.vmem [#allocation6], %s182
        %p184 = scmp.lt.s32.totalorder %s30, 1
        %s185 = scalar_select %p184, %s30, 1
        %s186 = smul.addr %s185, 8
        %s187 = scalar_lea.vmem %s2, %s186
        %s188 = smul.u32 %s30, 8
        %s189 = sshra.s32 %s188, 7
        %s190 = sand.u32 %s188, 127
        %s191 = sadd.s32 %s189, %s29
        %s192 = smul.u32 %s191, 128
        %s193 = sshra.s32 %s188, 7
        %s194 = sand.u32 %s188, 127
        %s195 = sadd.s32 %s192, %s194
        %s196 = sld [smem:[#allocation5 + %s195]]
        %s197 = scalar_lea.vmem %s1, %s196
        %p199 = scmp.lt.u32.totalorder 1, 8
        %p200 = pneg %p199
        // Predicated region
        $region33: #{tpu_custom_call.1} parent=31 // pred_check
          _
        $region34: #{tpu_custom_call.1} parent=31 // pred_check_branch
          %202 = sbr.rel (%p199) target = $region36
        $region35: #{tpu_custom_call.1} parent=31 // pred_region
          %s218 = sand.u32 1, 7
          %p219 = scmp.eq.s32.totalorder %s218, 0
          %p220 = pneg %p219
          // Predicated region
          $region48: #{tpu_custom_call.1} parent=35 // pred_check
            _
          $region49: #{tpu_custom_call.1} parent=35 // pred_check_branch
            %222 = sbr.rel (%p219) target = $region51
          $region50: #{tpu_custom_call.1} parent=35 // pred_region
            %s223 = sand.u32 1, 7
            %s224 = ssub.s32 1, %s223
            %s225 = scalar_lea.vmem %s197, %s224
            %s226 = ssub.s32 1, %s223
            %s227 = scalar_lea.vmem [#allocation2], %s226
            %s228 = sshll.u32 1, %s223
            %s229 = ssub.s32 %s228, 1
            loop: start=0, step=1, limit=1
            $region52: #{tpu_custom_call.1} parent=50 // loop_pre_header
              _
            $region53: #{tpu_custom_call.1} parent=50 // loop_header
              %s231 = sphi 0, %s235
              %p232 = scmp.ge.s32.totalorder %s231, 1
              %s236 = sphi %s225, %s225
              %s237 = sphi %s227, %s227
            $region54: #{tpu_custom_call.1} parent=50 // loop_header_branch
              %234 = sbr.rel (%p232) target = $region58
            $region55: #{tpu_custom_call.1} parent=50 // loop_body
              %v238 = vld [vmem:[%s236] sm:%s229]
              %239 = vst [vmem:[%s237] sm:%s229] %v238
            $region56: #{tpu_custom_call.1} parent=50 // loop_footer
              %s235 = sadd.s32 1, %s231
            $region57: #{tpu_custom_call.1} parent=50 // loop_footer_branch
              %230 = sbr.rel target = $region53
            $region58: #{tpu_custom_call.1} parent=50 // loop_exit
              _
          $region51: #{tpu_custom_call.1} parent=35 // pred_fallthru
            _
        $region36: #{tpu_custom_call.1} parent=31 // pred_fallthru
          _
        // Predicated region
        $region37: #{tpu_custom_call.1} parent=31 // pred_check
          %p203 = pneg %p199
        $region38: #{tpu_custom_call.1} parent=31 // pred_check_branch
          %205 = sbr.rel (%p203) target = $region40
        $region39: #{tpu_custom_call.1} parent=31 // pred_region
          %s206 = sshll.u32 1, 1
          %s207 = ssub.s32 %s206, 1
          loop: start=0, step=1, limit=1
          $region41: #{tpu_custom_call.1} parent=39 // loop_pre_header
            _
          $region42: #{tpu_custom_call.1} parent=39 // loop_header
            %s209 = sphi 0, %s213
            %p210 = scmp.ge.s32.totalorder %s209, 1
            %s214 = sphi %s197, %s197
            %s215 = sphi [#allocation2], [#allocation2]
          $region43: #{tpu_custom_call.1} parent=39 // loop_header_branch
            %212 = sbr.rel (%p210) target = $region47
          $region44: #{tpu_custom_call.1} parent=39 // loop_body
            %v216 = vld [vmem:[%s214] sm:%s207]
            %217 = vst [vmem:[%s215] sm:%s207] %v216
          $region45: #{tpu_custom_call.1} parent=39 // loop_footer
            %s213 = sadd.s32 1, %s209
          $region46: #{tpu_custom_call.1} parent=39 // loop_footer_branch
            %208 = sbr.rel target = $region42
          $region47: #{tpu_custom_call.1} parent=39 // loop_exit
            _
        $region40: #{tpu_custom_call.1} parent=31 // pred_fallthru
          _
        // Predicated region
        $region59: #{tpu_custom_call.1} parent=31 // pred_check
          _
        $region60: #{tpu_custom_call.1} parent=31 // pred_check_branch
          %242 = sbr.rel (0) target = $region62
        $region61: #{tpu_custom_call.1} parent=31 // pred_region
          %243 = vsyncadd [#allocation3], 16
        $region62: #{tpu_custom_call.1} parent=31 // pred_fallthru
          _
        %s244 = sadd.s32 %s188, 1
        %s245 = sshra.s32 %s244, 7
        %s246 = sand.u32 %s244, 127
        %s247 = sadd.s32 %s245, %s29
        %s248 = smul.u32 %s247, 128
        %s249 = sshra.s32 %s244, 7
        %s250 = sand.u32 %s244, 127
        %s251 = sadd.s32 %s248, %s250
        %s252 = sld [smem:[#allocation5 + %s251]]
        %s253 = scalar_lea.vmem %s1, %s252
        %s254 = scalar_lea.vmem [#allocation2], 1
        %s255 = scalar_lea.sflag [#allocation3], 1
        %p257 = scmp.lt.u32.totalorder 1, 8
        %p258 = pneg %p257
        // Predicated region
        $region63: #{tpu_custom_call.1} parent=31 // pred_check
          _
        $region64: #{tpu_custom_call.1} parent=31 // pred_check_branch
          %260 = sbr.rel (%p257) target = $region66
        $region65: #{tpu_custom_call.1} parent=31 // pred_region
          %s276 = sand.u32 1, 7
          %p277 = scmp.eq.s32.totalorder %s276, 0
          %p278 = pneg %p277
          // Predicated region
          $region78: #{tpu_custom_call.1} parent=65 // pred_check
            _
          $region79: #{tpu_custom_call.1} parent=65 // pred_check_branch
            %280 = sbr.rel (%p277) target = $region81
          $region80: #{tpu_custom_call.1} parent=65 // pred_region
            %s281 = sand.u32 1, 7
            %s282 = ssub.s32 1, %s281
            %s283 = scalar_lea.vmem %s253, %s282
            %s284 = ssub.s32 1, %s281
            %s285 = scalar_lea.vmem %s254, %s284 [#allocation2]
            %s286 = sshll.u32 1, %s281
            %s287 = ssub.s32 %s286, 1
            loop: start=0, step=1, limit=1
            $region82: #{tpu_custom_call.1} parent=80 // loop_pre_header
              _
            $region83: #{tpu_custom_call.1} parent=80 // loop_header
              %s289 = sphi 0, %s293
              %p290 = scmp.ge.s32.totalorder %s289, 1
              %s294 = sphi %s283, %s283
              %s295 = sphi %s285, %s285
            $region84: #{tpu_custom_call.1} parent=80 // loop_header_branch
              %292 = sbr.rel (%p290) target = $region88
            $region85: #{tpu_custom_call.1} parent=80 // loop_body
              %v296 = vld [vmem:[%s294] sm:%s287]
              %297 = vst [vmem:[%s295] sm:%s287] %v296
            $region86: #{tpu_custom_call.1} parent=80 // loop_footer
              %s293 = sadd.s32 1, %s289
            $region87: #{tpu_custom_call.1} parent=80 // loop_footer_branch
              %288 = sbr.rel target = $region83
            $region88: #{tpu_custom_call.1} parent=80 // loop_exit
              _
          $region81: #{tpu_custom_call.1} parent=65 // pred_fallthru
            _
        $region66: #{tpu_custom_call.1} parent=31 // pred_fallthru
          _
        // Predicated region
        $region67: #{tpu_custom_call.1} parent=31 // pred_check
          %p261 = pneg %p257
        $region68: #{tpu_custom_call.1} parent=31 // pred_check_branch
          %263 = sbr.rel (%p261) target = $region70
        $region69: #{tpu_custom_call.1} parent=31 // pred_region
          %s264 = sshll.u32 1, 1
          %s265 = ssub.s32 %s264, 1
          loop: start=0, step=1, limit=1
          $region71: #{tpu_custom_call.1} parent=69 // loop_pre_header
            _
          $region72: #{tpu_custom_call.1} parent=69 // loop_header
            %s267 = sphi 0, %s271
            %p268 = scmp.ge.s32.totalorder %s267, 1
            %s272 = sphi %s253, %s253
            %s273 = sphi %s254, %s254
          $region73: #{tpu_custom_call.1} parent=69 // loop_header_branch
            %270 = sbr.rel (%p268) target = $region77
          $region74: #{tpu_custom_call.1} parent=69 // loop_body
            %v274 = vld [vmem:[%s272] sm:%s265]
            %275 = vst [vmem:[%s273] sm:%s265] %v274
          $region75: #{tpu_custom_call.1} parent=69 // loop_footer
            %s271 = sadd.s32 1, %s267
          $region76: #{tpu_custom_call.1} parent=69 // loop_footer_branch
            %266 = sbr.rel target = $region72
          $region77: #{tpu_custom_call.1} parent=69 // loop_exit
            _
        $region70: #{tpu_custom_call.1} parent=31 // pred_fallthru
          _
        // Predicated region
        $region89: #{tpu_custom_call.1} parent=31 // pred_check
          _
        $region90: #{tpu_custom_call.1} parent=31 // pred_check_branch
          %300 = sbr.rel (0) target = $region92
        $region91: #{tpu_custom_call.1} parent=31 // pred_region
          %301 = vsyncadd %s255, 16
        $region92: #{tpu_custom_call.1} parent=31 // pred_fallthru
          _
        %s302 = sadd.s32 %s188, 2
        %s303 = sshra.s32 %s302, 7
        %s304 = sand.u32 %s302, 127
        %s305 = sadd.s32 %s303, %s29
        %s306 = smul.u32 %s305, 128
        %s307 = sshra.s32 %s302, 7
        %s308 = sand.u32 %s302, 127
        %s309 = sadd.s32 %s306, %s308
        %s310 = sld [smem:[#allocation5 + %s309]]
        %s311 = scalar_lea.vmem %s1, %s310
        %s312 = scalar_lea.vmem [#allocation2], 2
        %s313 = scalar_lea.sflag [#allocation3], 2
        %p315 = scmp.lt.u32.totalorder 1, 8
        %p316 = pneg %p315
        // Predicated region
        $region93: #{tpu_custom_call.1} parent=31 // pred_check
          _
        $region94: #{tpu_custom_call.1} parent=31 // pred_check_branch
          %318 = sbr.rel (%p315) target = $region96
        $region95: #{tpu_custom_call.1} parent=31 // pred_region
          %s334 = sand.u32 1, 7
          %p335 = scmp.eq.s32.totalorder %s334, 0
          %p336 = pneg %p335
          // Predicated region
          $region108: #{tpu_custom_call.1} parent=95 // pred_check
            _
          $region109: #{tpu_custom_call.1} parent=95 // pred_check_branch
            %338 = sbr.rel (%p335) target = $region111
          $region110: #{tpu_custom_call.1} parent=95 // pred_region
            %s339 = sand.u32 1, 7
            %s340 = ssub.s32 1, %s339
            %s341 = scalar_lea.vmem %s311, %s340
            %s342 = ssub.s32 1, %s339
            %s343 = scalar_lea.vmem %s312, %s342 [#allocation2]
            %s344 = sshll.u32 1, %s339
            %s345 = ssub.s32 %s344, 1
            loop: start=0, step=1, limit=1
            $region112: #{tpu_custom_call.1} parent=110 // loop_pre_header
              _
            $region113: #{tpu_custom_call.1} parent=110 // loop_header
              %s347 = sphi 0, %s351
              %p348 = scmp.ge.s32.totalorder %s347, 1
              %s352 = sphi %s341, %s341
              %s353 = sphi %s343, %s343
            $region114: #{tpu_custom_call.1} parent=110 // loop_header_branch
              %350 = sbr.rel (%p348) target = $region118
            $region115: #{tpu_custom_call.1} parent=110 // loop_body
              %v354 = vld [vmem:[%s352] sm:%s345]
              %355 = vst [vmem:[%s353] sm:%s345] %v354
            $region116: #{tpu_custom_call.1} parent=110 // loop_footer
              %s351 = sadd.s32 1, %s347
            $region117: #{tpu_custom_call.1} parent=110 // loop_footer_branch
              %346 = sbr.rel target = $region113
            $region118: #{tpu_custom_call.1} parent=110 // loop_exit
              _
          $region111: #{tpu_custom_call.1} parent=95 // pred_fallthru
            _
        $region96: #{tpu_custom_call.1} parent=31 // pred_fallthru
          _
        // Predicated region
        $region97: #{tpu_custom_call.1} parent=31 // pred_check
          %p319 = pneg %p315
        $region98: #{tpu_custom_call.1} parent=31 // pred_check_branch
          %321 = sbr.rel (%p319) target = $region100
        $region99: #{tpu_custom_call.1} parent=31 // pred_region
          %s322 = sshll.u32 1, 1
          %s323 = ssub.s32 %s322, 1
          loop: start=0, step=1, limit=1
          $region101: #{tpu_custom_call.1} parent=99 // loop_pre_header
            _
          $region102: #{tpu_custom_call.1} parent=99 // loop_header
            %s325 = sphi 0, %s329
            %p326 = scmp.ge.s32.totalorder %s325, 1
            %s330 = sphi %s311, %s311
            %s331 = sphi %s312, %s312
          $region103: #{tpu_custom_call.1} parent=99 // loop_header_branch
            %328 = sbr.rel (%p326) target = $region107
          $region104: #{tpu_custom_call.1} parent=99 // loop_body
            %v332 = vld [vmem:[%s330] sm:%s323]
            %333 = vst [vmem:[%s331] sm:%s323] %v332
          $region105: #{tpu_custom_call.1} parent=99 // loop_footer
            %s329 = sadd.s32 1, %s325
          $region106: #{tpu_custom_call.1} parent=99 // loop_footer_branch
            %324 = sbr.rel target = $region102
          $region107: #{tpu_custom_call.1} parent=99 // loop_exit
            _
        $region100: #{tpu_custom_call.1} parent=31 // pred_fallthru
          _
        // Predicated region
        $region119: #{tpu_custom_call.1} parent=31 // pred_check
          _
        $region120: #{tpu_custom_call.1} parent=31 // pred_check_branch
          %358 = sbr.rel (0) target = $region122
        $region121: #{tpu_custom_call.1} parent=31 // pred_region
          %359 = vsyncadd %s313, 16
        $region122: #{tpu_custom_call.1} parent=31 // pred_fallthru
          _
        %s360 = sadd.s32 %s188, 3
        %s361 = sshra.s32 %s360, 7
        %s362 = sand.u32 %s360, 127
        %s363 = sadd.s32 %s361, %s29
        %s364 = smul.u32 %s363, 128
        %s365 = sshra.s32 %s360, 7
        %s366 = sand.u32 %s360, 127
        %s367 = sadd.s32 %s364, %s366
        %s368 = sld [smem:[#allocation5 + %s367]]
        %s369 = scalar_lea.vmem %s1, %s368
        %s370 = scalar_lea.vmem [#allocation2], 3
        %s371 = scalar_lea.sflag [#allocation3], 3
        %p373 = scmp.lt.u32.totalorder 1, 8
        %p374 = pneg %p373
        // Predicated region
        $region123: #{tpu_custom_call.1} parent=31 // pred_check
          _
        $region124: #{tpu_custom_call.1} parent=31 // pred_check_branch
          %376 = sbr.rel (%p373) target = $region126
        $region125: #{tpu_custom_call.1} parent=31 // pred_region
          %s392 = sand.u32 1, 7
          %p393 = scmp.eq.s32.totalorder %s392, 0
          %p394 = pneg %p393
          // Predicated region
          $region138: #{tpu_custom_call.1} parent=125 // pred_check
            _
          $region139: #{tpu_custom_call.1} parent=125 // pred_check_branch
            %396 = sbr.rel (%p393) target = $region141
          $region140: #{tpu_custom_call.1} parent=125 // pred_region
            %s397 = sand.u32 1, 7
            %s398 = ssub.s32 1, %s397
            %s399 = scalar_lea.vmem %s369, %s398
            %s400 = ssub.s32 1, %s397
            %s401 = scalar_lea.vmem %s370, %s400 [#allocation2]
            %s402 = sshll.u32 1, %s397
            %s403 = ssub.s32 %s402, 1
            loop: start=0, step=1, limit=1
            $region142: #{tpu_custom_call.1} parent=140 // loop_pre_header
              _
            $region143: #{tpu_custom_call.1} parent=140 // loop_header
              %s405 = sphi 0, %s409
              %p406 = scmp.ge.s32.totalorder %s405, 1
              %s410 = sphi %s399, %s399
              %s411 = sphi %s401, %s401
            $region144: #{tpu_custom_call.1} parent=140 // loop_header_branch
              %408 = sbr.rel (%p406) target = $region148
            $region145: #{tpu_custom_call.1} parent=140 // loop_body
              %v412 = vld [vmem:[%s410] sm:%s403]
              %413 = vst [vmem:[%s411] sm:%s403] %v412
            $region146: #{tpu_custom_call.1} parent=140 // loop_footer
              %s409 = sadd.s32 1, %s405
            $region147: #{tpu_custom_call.1} parent=140 // loop_footer_branch
              %404 = sbr.rel target = $region143
            $region148: #{tpu_custom_call.1} parent=140 // loop_exit
              _
          $region141: #{tpu_custom_call.1} parent=125 // pred_fallthru
            _
        $region126: #{tpu_custom_call.1} parent=31 // pred_fallthru
          _
        // Predicated region
        $region127: #{tpu_custom_call.1} parent=31 // pred_check
          %p377 = pneg %p373
        $region128: #{tpu_custom_call.1} parent=31 // pred_check_branch
          %379 = sbr.rel (%p377) target = $region130
        $region129: #{tpu_custom_call.1} parent=31 // pred_region
          %s380 = sshll.u32 1, 1
          %s381 = ssub.s32 %s380, 1
          loop: start=0, step=1, limit=1
          $region131: #{tpu_custom_call.1} parent=129 // loop_pre_header
            _
          $region132: #{tpu_custom_call.1} parent=129 // loop_header
            %s383 = sphi 0, %s387
            %p384 = scmp.ge.s32.totalorder %s383, 1
            %s388 = sphi %s369, %s369
            %s389 = sphi %s370, %s370
          $region133: #{tpu_custom_call.1} parent=129 // loop_header_branch
            %386 = sbr.rel (%p384) target = $region137
          $region134: #{tpu_custom_call.1} parent=129 // loop_body
            %v390 = vld [vmem:[%s388] sm:%s381]
            %391 = vst [vmem:[%s389] sm:%s381] %v390
          $region135: #{tpu_custom_call.1} parent=129 // loop_footer
            %s387 = sadd.s32 1, %s383
          $region136: #{tpu_custom_call.1} parent=129 // loop_footer_branch
            %382 = sbr.rel target = $region132
          $region137: #{tpu_custom_call.1} parent=129 // loop_exit
            _
        $region130: #{tpu_custom_call.1} parent=31 // pred_fallthru
          _
        // Predicated region
        $region149: #{tpu_custom_call.1} parent=31 // pred_check
          _
        $region150: #{tpu_custom_call.1} parent=31 // pred_check_branch
          %416 = sbr.rel (0) target = $region152
        $region151: #{tpu_custom_call.1} parent=31 // pred_region
          %417 = vsyncadd %s371, 16
        $region152: #{tpu_custom_call.1} parent=31 // pred_fallthru
          _
        %s418 = sadd.s32 %s188, 4
        %s419 = sshra.s32 %s418, 7
        %s420 = sand.u32 %s418, 127
        %s421 = sadd.s32 %s419, %s29
        %s422 = smul.u32 %s421, 128
        %s423 = sshra.s32 %s418, 7
        %s424 = sand.u32 %s418, 127
        %s425 = sadd.s32 %s422, %s424
        %s426 = sld [smem:[#allocation5 + %s425]]
        %s427 = scalar_lea.vmem %s1, %s426
        %s428 = scalar_lea.vmem [#allocation2], 4
        %s429 = scalar_lea.sflag [#allocation3], 4
        %p431 = scmp.lt.u32.totalorder 1, 8
        %p432 = pneg %p431
        // Predicated region
        $region153: #{tpu_custom_call.1} parent=31 // pred_check
          _
        $region154: #{tpu_custom_call.1} parent=31 // pred_check_branch
          %434 = sbr.rel (%p431) target = $region156
        $region155: #{tpu_custom_call.1} parent=31 // pred_region
          %s450 = sand.u32 1, 7
          %p451 = scmp.eq.s32.totalorder %s450, 0
          %p452 = pneg %p451
          // Predicated region
          $region168: #{tpu_custom_call.1} parent=155 // pred_check
            _
          $region169: #{tpu_custom_call.1} parent=155 // pred_check_branch
            %454 = sbr.rel (%p451) target = $region171
          $region170: #{tpu_custom_call.1} parent=155 // pred_region
            %s455 = sand.u32 1, 7
            %s456 = ssub.s32 1, %s455
            %s457 = scalar_lea.vmem %s427, %s456
            %s458 = ssub.s32 1, %s455
            %s459 = scalar_lea.vmem %s428, %s458 [#allocation2]
            %s460 = sshll.u32 1, %s455
            %s461 = ssub.s32 %s460, 1
            loop: start=0, step=1, limit=1
            $region172: #{tpu_custom_call.1} parent=170 // loop_pre_header
              _
            $region173: #{tpu_custom_call.1} parent=170 // loop_header
              %s463 = sphi 0, %s467
              %p464 = scmp.ge.s32.totalorder %s463, 1
              %s468 = sphi %s457, %s457
              %s469 = sphi %s459, %s459
            $region174: #{tpu_custom_call.1} parent=170 // loop_header_branch
              %466 = sbr.rel (%p464) target = $region178
            $region175: #{tpu_custom_call.1} parent=170 // loop_body
              %v470 = vld [vmem:[%s468] sm:%s461]
              %471 = vst [vmem:[%s469] sm:%s461] %v470
            $region176: #{tpu_custom_call.1} parent=170 // loop_footer
              %s467 = sadd.s32 1, %s463
            $region177: #{tpu_custom_call.1} parent=170 // loop_footer_branch
              %462 = sbr.rel target = $region173
            $region178: #{tpu_custom_call.1} parent=170 // loop_exit
              _
          $region171: #{tpu_custom_call.1} parent=155 // pred_fallthru
            _
        $region156: #{tpu_custom_call.1} parent=31 // pred_fallthru
          _
        // Predicated region
        $region157: #{tpu_custom_call.1} parent=31 // pred_check
          %p435 = pneg %p431
        $region158: #{tpu_custom_call.1} parent=31 // pred_check_branch
          %437 = sbr.rel (%p435) target = $region160
        $region159: #{tpu_custom_call.1} parent=31 // pred_region
          %s438 = sshll.u32 1, 1
          %s439 = ssub.s32 %s438, 1
          loop: start=0, step=1, limit=1
          $region161: #{tpu_custom_call.1} parent=159 // loop_pre_header
            _
          $region162: #{tpu_custom_call.1} parent=159 // loop_header
            %s441 = sphi 0, %s445
            %p442 = scmp.ge.s32.totalorder %s441, 1
            %s446 = sphi %s427, %s427
            %s447 = sphi %s428, %s428
          $region163: #{tpu_custom_call.1} parent=159 // loop_header_branch
            %444 = sbr.rel (%p442) target = $region167
          $region164: #{tpu_custom_call.1} parent=159 // loop_body
            %v448 = vld [vmem:[%s446] sm:%s439]
            %449 = vst [vmem:[%s447] sm:%s439] %v448
          $region165: #{tpu_custom_call.1} parent=159 // loop_footer
            %s445 = sadd.s32 1, %s441
          $region166: #{tpu_custom_call.1} parent=159 // loop_footer_branch
            %440 = sbr.rel target = $region162
          $region167: #{tpu_custom_call.1} parent=159 // loop_exit
            _
        $region160: #{tpu_custom_call.1} parent=31 // pred_fallthru
          _
        // Predicated region
        $region179: #{tpu_custom_call.1} parent=31 // pred_check
          _
        $region180: #{tpu_custom_call.1} parent=31 // pred_check_branch
          %474 = sbr.rel (0) target = $region182
        $region181: #{tpu_custom_call.1} parent=31 // pred_region
          %475 = vsyncadd %s429, 16
        $region182: #{tpu_custom_call.1} parent=31 // pred_fallthru
          _
        %s476 = sadd.s32 %s188, 5
        %s477 = sshra.s32 %s476, 7
        %s478 = sand.u32 %s476, 127
        %s479 = sadd.s32 %s477, %s29
        %s480 = smul.u32 %s479, 128
        %s481 = sshra.s32 %s476, 7
        %s482 = sand.u32 %s476, 127
        %s483 = sadd.s32 %s480, %s482
        %s484 = sld [smem:[#allocation5 + %s483]]
        %s485 = scalar_lea.vmem %s1, %s484
        %s486 = scalar_lea.vmem [#allocation2], 5
        %s487 = scalar_lea.sflag [#allocation3], 5
        %p489 = scmp.lt.u32.totalorder 1, 8
        %p490 = pneg %p489
        // Predicated region
        $region183: #{tpu_custom_call.1} parent=31 // pred_check
          _
        $region184: #{tpu_custom_call.1} parent=31 // pred_check_branch
          %492 = sbr.rel (%p489) target = $region186
        $region185: #{tpu_custom_call.1} parent=31 // pred_region
          %s508 = sand.u32 1, 7
          %p509 = scmp.eq.s32.totalorder %s508, 0
          %p510 = pneg %p509
          // Predicated region
          $region198: #{tpu_custom_call.1} parent=185 // pred_check
            _
          $region199: #{tpu_custom_call.1} parent=185 // pred_check_branch
            %512 = sbr.rel (%p509) target = $region201
          $region200: #{tpu_custom_call.1} parent=185 // pred_region
            %s513 = sand.u32 1, 7
            %s514 = ssub.s32 1, %s513
            %s515 = scalar_lea.vmem %s485, %s514
            %s516 = ssub.s32 1, %s513
            %s517 = scalar_lea.vmem %s486, %s516 [#allocation2]
            %s518 = sshll.u32 1, %s513
            %s519 = ssub.s32 %s518, 1
            loop: start=0, step=1, limit=1
            $region202: #{tpu_custom_call.1} parent=200 // loop_pre_header
              _
            $region203: #{tpu_custom_call.1} parent=200 // loop_header
              %s521 = sphi 0, %s525
              %p522 = scmp.ge.s32.totalorder %s521, 1
              %s526 = sphi %s515, %s515
              %s527 = sphi %s517, %s517
            $region204: #{tpu_custom_call.1} parent=200 // loop_header_branch
              %524 = sbr.rel (%p522) target = $region208
            $region205: #{tpu_custom_call.1} parent=200 // loop_body
              %v528 = vld [vmem:[%s526] sm:%s519]
              %529 = vst [vmem:[%s527] sm:%s519] %v528
            $region206: #{tpu_custom_call.1} parent=200 // loop_footer
              %s525 = sadd.s32 1, %s521
            $region207: #{tpu_custom_call.1} parent=200 // loop_footer_branch
              %520 = sbr.rel target = $region203
            $region208: #{tpu_custom_call.1} parent=200 // loop_exit
              _
          $region201: #{tpu_custom_call.1} parent=185 // pred_fallthru
            _
        $region186: #{tpu_custom_call.1} parent=31 // pred_fallthru
          _
        // Predicated region
        $region187: #{tpu_custom_call.1} parent=31 // pred_check
          %p493 = pneg %p489
        $region188: #{tpu_custom_call.1} parent=31 // pred_check_branch
          %495 = sbr.rel (%p493) target = $region190
        $region189: #{tpu_custom_call.1} parent=31 // pred_region
          %s496 = sshll.u32 1, 1
          %s497 = ssub.s32 %s496, 1
          loop: start=0, step=1, limit=1
          $region191: #{tpu_custom_call.1} parent=189 // loop_pre_header
            _
          $region192: #{tpu_custom_call.1} parent=189 // loop_header
            %s499 = sphi 0, %s503
            %p500 = scmp.ge.s32.totalorder %s499, 1
            %s504 = sphi %s485, %s485
            %s505 = sphi %s486, %s486
          $region193: #{tpu_custom_call.1} parent=189 // loop_header_branch
            %502 = sbr.rel (%p500) target = $region197
          $region194: #{tpu_custom_call.1} parent=189 // loop_body
            %v506 = vld [vmem:[%s504] sm:%s497]
            %507 = vst [vmem:[%s505] sm:%s497] %v506
          $region195: #{tpu_custom_call.1} parent=189 // loop_footer
            %s503 = sadd.s32 1, %s499
          $region196: #{tpu_custom_call.1} parent=189 // loop_footer_branch
            %498 = sbr.rel target = $region192
          $region197: #{tpu_custom_call.1} parent=189 // loop_exit
            _
        $region190: #{tpu_custom_call.1} parent=31 // pred_fallthru
          _
        // Predicated region
        $region209: #{tpu_custom_call.1} parent=31 // pred_check
          _
        $region210: #{tpu_custom_call.1} parent=31 // pred_check_branch
          %532 = sbr.rel (0) target = $region212
        $region211: #{tpu_custom_call.1} parent=31 // pred_region
          %533 = vsyncadd %s487, 16
        $region212: #{tpu_custom_call.1} parent=31 // pred_fallthru
          _
        %s534 = sadd.s32 %s188, 6
        %s535 = sshra.s32 %s534, 7
        %s536 = sand.u32 %s534, 127
        %s537 = sadd.s32 %s535, %s29
        %s538 = smul.u32 %s537, 128
        %s539 = sshra.s32 %s534, 7
        %s540 = sand.u32 %s534, 127
        %s541 = sadd.s32 %s538, %s540
        %s542 = sld [smem:[#allocation5 + %s541]]
        %s543 = scalar_lea.vmem %s1, %s542
        %s544 = scalar_lea.vmem [#allocation2], 6
        %s545 = scalar_lea.sflag [#allocation3], 6
        %p547 = scmp.lt.u32.totalorder 1, 8
        %p548 = pneg %p547
        // Predicated region
        $region213: #{tpu_custom_call.1} parent=31 // pred_check
          _
        $region214: #{tpu_custom_call.1} parent=31 // pred_check_branch
          %550 = sbr.rel (%p547) target = $region216
        $region215: #{tpu_custom_call.1} parent=31 // pred_region
          %s566 = sand.u32 1, 7
          %p567 = scmp.eq.s32.totalorder %s566, 0
          %p568 = pneg %p567
          // Predicated region
          $region228: #{tpu_custom_call.1} parent=215 // pred_check
            _
          $region229: #{tpu_custom_call.1} parent=215 // pred_check_branch
            %570 = sbr.rel (%p567) target = $region231
          $region230: #{tpu_custom_call.1} parent=215 // pred_region
            %s571 = sand.u32 1, 7
            %s572 = ssub.s32 1, %s571
            %s573 = scalar_lea.vmem %s543, %s572
            %s574 = ssub.s32 1, %s571
            %s575 = scalar_lea.vmem %s544, %s574 [#allocation2]
            %s576 = sshll.u32 1, %s571
            %s577 = ssub.s32 %s576, 1
            loop: start=0, step=1, limit=1
            $region232: #{tpu_custom_call.1} parent=230 // loop_pre_header
              _
            $region233: #{tpu_custom_call.1} parent=230 // loop_header
              %s579 = sphi 0, %s583
              %p580 = scmp.ge.s32.totalorder %s579, 1
              %s584 = sphi %s573, %s573
              %s585 = sphi %s575, %s575
            $region234: #{tpu_custom_call.1} parent=230 // loop_header_branch
              %582 = sbr.rel (%p580) target = $region238
            $region235: #{tpu_custom_call.1} parent=230 // loop_body
              %v586 = vld [vmem:[%s584] sm:%s577]
              %587 = vst [vmem:[%s585] sm:%s577] %v586
            $region236: #{tpu_custom_call.1} parent=230 // loop_footer
              %s583 = sadd.s32 1, %s579
            $region237: #{tpu_custom_call.1} parent=230 // loop_footer_branch
              %578 = sbr.rel target = $region233
            $region238: #{tpu_custom_call.1} parent=230 // loop_exit
              _
          $region231: #{tpu_custom_call.1} parent=215 // pred_fallthru
            _
        $region216: #{tpu_custom_call.1} parent=31 // pred_fallthru
          _
        // Predicated region
        $region217: #{tpu_custom_call.1} parent=31 // pred_check
          %p551 = pneg %p547
        $region218: #{tpu_custom_call.1} parent=31 // pred_check_branch
          %553 = sbr.rel (%p551) target = $region220
        $region219: #{tpu_custom_call.1} parent=31 // pred_region
          %s554 = sshll.u32 1, 1
          %s555 = ssub.s32 %s554, 1
          loop: start=0, step=1, limit=1
          $region221: #{tpu_custom_call.1} parent=219 // loop_pre_header
            _
          $region222: #{tpu_custom_call.1} parent=219 // loop_header
            %s557 = sphi 0, %s561
            %p558 = scmp.ge.s32.totalorder %s557, 1
            %s562 = sphi %s543, %s543
            %s563 = sphi %s544, %s544
          $region223: #{tpu_custom_call.1} parent=219 // loop_header_branch
            %560 = sbr.rel (%p558) target = $region227
          $region224: #{tpu_custom_call.1} parent=219 // loop_body
            %v564 = vld [vmem:[%s562] sm:%s555]
            %565 = vst [vmem:[%s563] sm:%s555] %v564
          $region225: #{tpu_custom_call.1} parent=219 // loop_footer
            %s561 = sadd.s32 1, %s557
          $region226: #{tpu_custom_call.1} parent=219 // loop_footer_branch
            %556 = sbr.rel target = $region222
          $region227: #{tpu_custom_call.1} parent=219 // loop_exit
            _
        $region220: #{tpu_custom_call.1} parent=31 // pred_fallthru
          _
        // Predicated region
        $region239: #{tpu_custom_call.1} parent=31 // pred_check
          _
        $region240: #{tpu_custom_call.1} parent=31 // pred_check_branch
          %590 = sbr.rel (0) target = $region242
        $region241: #{tpu_custom_call.1} parent=31 // pred_region
          %591 = vsyncadd %s545, 16
        $region242: #{tpu_custom_call.1} parent=31 // pred_fallthru
          _
        %s592 = sadd.s32 %s188, 7
        %s593 = sshra.s32 %s592, 7
        %s594 = sand.u32 %s592, 127
        %s595 = sadd.s32 %s593, %s29
        %s596 = smul.u32 %s595, 128
        %s597 = sshra.s32 %s592, 7
        %s598 = sand.u32 %s592, 127
        %s599 = sadd.s32 %s596, %s598
        %s600 = sld [smem:[#allocation5 + %s599]]
        %s601 = scalar_lea.vmem %s1, %s600
        %s602 = scalar_lea.vmem [#allocation2], 7
        %s603 = scalar_lea.sflag [#allocation3], 7
        %p605 = scmp.lt.u32.totalorder 1, 8
        %p606 = pneg %p605
        // Predicated region
        $region243: #{tpu_custom_call.1} parent=31 // pred_check
          _
        $region244: #{tpu_custom_call.1} parent=31 // pred_check_branch
          %608 = sbr.rel (%p605) target = $region246
        $region245: #{tpu_custom_call.1} parent=31 // pred_region
          %s624 = sand.u32 1, 7
          %p625 = scmp.eq.s32.totalorder %s624, 0
          %p626 = pneg %p625
          // Predicated region
          $region258: #{tpu_custom_call.1} parent=245 // pred_check
            _
          $region259: #{tpu_custom_call.1} parent=245 // pred_check_branch
            %628 = sbr.rel (%p625) target = $region261
          $region260: #{tpu_custom_call.1} parent=245 // pred_region
            %s629 = sand.u32 1, 7
            %s630 = ssub.s32 1, %s629
            %s631 = scalar_lea.vmem %s601, %s630
            %s632 = ssub.s32 1, %s629
            %s633 = scalar_lea.vmem %s602, %s632 [#allocation2]
            %s634 = sshll.u32 1, %s629
            %s635 = ssub.s32 %s634, 1
            loop: start=0, step=1, limit=1
            $region262: #{tpu_custom_call.1} parent=260 // loop_pre_header
              _
            $region263: #{tpu_custom_call.1} parent=260 // loop_header
              %s637 = sphi 0, %s641
              %p638 = scmp.ge.s32.totalorder %s637, 1
              %s642 = sphi %s631, %s631
              %s643 = sphi %s633, %s633
            $region264: #{tpu_custom_call.1} parent=260 // loop_header_branch
              %640 = sbr.rel (%p638) target = $region268
            $region265: #{tpu_custom_call.1} parent=260 // loop_body
              %v644 = vld [vmem:[%s642] sm:%s635]
              %645 = vst [vmem:[%s643] sm:%s635] %v644
            $region266: #{tpu_custom_call.1} parent=260 // loop_footer
              %s641 = sadd.s32 1, %s637
            $region267: #{tpu_custom_call.1} parent=260 // loop_footer_branch
              %636 = sbr.rel target = $region263
            $region268: #{tpu_custom_call.1} parent=260 // loop_exit
              _
          $region261: #{tpu_custom_call.1} parent=245 // pred_fallthru
            _
        $region246: #{tpu_custom_call.1} parent=31 // pred_fallthru
          _
        // Predicated region
        $region247: #{tpu_custom_call.1} parent=31 // pred_check
          %p609 = pneg %p605
        $region248: #{tpu_custom_call.1} parent=31 // pred_check_branch
          %611 = sbr.rel (%p609) target = $region250
        $region249: #{tpu_custom_call.1} parent=31 // pred_region
          %s612 = sshll.u32 1, 1
          %s613 = ssub.s32 %s612, 1
          loop: start=0, step=1, limit=1
          $region251: #{tpu_custom_call.1} parent=249 // loop_pre_header
            _
          $region252: #{tpu_custom_call.1} parent=249 // loop_header
            %s615 = sphi 0, %s619
            %p616 = scmp.ge.s32.totalorder %s615, 1
            %s620 = sphi %s601, %s601
            %s621 = sphi %s602, %s602
          $region253: #{tpu_custom_call.1} parent=249 // loop_header_branch
            %618 = sbr.rel (%p616) target = $region257
          $region254: #{tpu_custom_call.1} parent=249 // loop_body
            %v622 = vld [vmem:[%s620] sm:%s613]
            %623 = vst [vmem:[%s621] sm:%s613] %v622
          $region255: #{tpu_custom_call.1} parent=249 // loop_footer
            %s619 = sadd.s32 1, %s615
          $region256: #{tpu_custom_call.1} parent=249 // loop_footer_branch
            %614 = sbr.rel target = $region252
          $region257: #{tpu_custom_call.1} parent=249 // loop_exit
            _
        $region250: #{tpu_custom_call.1} parent=31 // pred_fallthru
          _
        // Predicated region
        $region269: #{tpu_custom_call.1} parent=31 // pred_check
          _
        $region270: #{tpu_custom_call.1} parent=31 // pred_check_branch
          %648 = sbr.rel (0) target = $region272
        $region271: #{tpu_custom_call.1} parent=31 // pred_region
          %649 = vsyncadd %s603, 16
        $region272: #{tpu_custom_call.1} parent=31 // pred_fallthru
          _
        loop: start=0, step=1, limit=8
        $region273: #{tpu_custom_call.1} parent=31 // loop_pre_header
          _
        $region274: #{tpu_custom_call.1} parent=31 // loop_header
          %s651 = sphi 0, %s655
          %p652 = scmp.ge.s32.totalorder %s651, 8
        $region275: #{tpu_custom_call.1} parent=31 // loop_header_branch
          %654 = sbr.rel (%p652) target = $region279
        $region276: #{tpu_custom_call.1} parent=31 // loop_body
          %p656 = scmp.lt.s32.totalorder %s651, 0
          %s657 = ssub.s32 0, %s651
          %s658 = scalar_select %p656, %s657, %s651
          %s659 = sand.u32 %s658, 7
          %s660 = ssub.s32 0, %s659
          %s661 = scalar_select %p656, %s660, %s659
          %p662 = scmp.ne.s32.totalorder %s661, 0
          %p663 = scmp.lt.s32.totalorder %s661, 0
          %p664 = pnand %p663, %p662
          %p665 = pneg %p664
          %s666 = sadd.s32 %s661, 8
          %s667 = scalar_select %p665, %s666, %s661
          %s668 = scalar_lea.sflag [#allocation3], %s667
          %670 = dma.done %s668, 16
          %s671 = sadd.s32 %s651, 8
          %p672 = scmp.lt.s32.totalorder %s671, 8
          // Predicated region
          $region280: #{tpu_custom_call.1} parent=276 // pred_check
            %p673 = pneg %p672
          $region281: #{tpu_custom_call.1} parent=276 // pred_check_branch
            %675 = sbr.rel (%p673) target = $region283
          $region282: #{tpu_custom_call.1} parent=276 // pred_region
            %s676 = sadd.s32 %s188, %s671
            %s677 = sshra.s32 %s676, 7
            %s678 = sand.u32 %s676, 127
            %s679 = sadd.s32 %s677, %s29
            %s680 = smul.u32 %s679, 128
            %s681 = sshra.s32 %s676, 7
            %s682 = sand.u32 %s676, 127
            %s683 = sadd.s32 %s680, %s682
            %s684 = sld [smem:[#allocation5 + %s683]]
            %p685 = scmp.lt.s32.totalorder %s671, 0
            %s686 = ssub.s32 0, %s671
            %s687 = scalar_select %p685, %s686, %s671
            %s688 = sand.u32 %s687, 7
            %s689 = ssub.s32 0, %s688
            %s690 = scalar_select %p685, %s689, %s688
            %p691 = scmp.ne.s32.totalorder %s690, 0
            %p692 = scmp.lt.s32.totalorder %s690, 0
            %p693 = pnand %p692, %p691
            %p694 = pneg %p693
            %s695 = sadd.s32 %s690, 8
            %s696 = scalar_select %p694, %s695, %s690
            %s697 = scalar_lea.vmem %s1, %s684
            %s698 = scalar_lea.vmem [#allocation2], %s671
            %s699 = scalar_lea.sflag [#allocation3], %s696
            %p701 = scmp.lt.u32.totalorder 1, 8
            %p702 = pneg %p701
            // Predicated region
            $region284: #{tpu_custom_call.1} parent=282 // pred_check
              _
            $region285: #{tpu_custom_call.1} parent=282 // pred_check_branch
              %704 = sbr.rel (%p701) target = $region287
            $region286: #{tpu_custom_call.1} parent=282 // pred_region
              %s720 = sand.u32 1, 7
              %p721 = scmp.eq.s32.totalorder %s720, 0
              %p722 = pneg %p721
              // Predicated region
              $region299: #{tpu_custom_call.1} parent=286 // pred_check
                _
              $region300: #{tpu_custom_call.1} parent=286 // pred_check_branch
                %724 = sbr.rel (%p721) target = $region302
              $region301: #{tpu_custom_call.1} parent=286 // pred_region
                %s725 = sand.u32 1, 7
                %s726 = ssub.s32 1, %s725
                %s727 = scalar_lea.vmem %s697, %s726
                %s728 = ssub.s32 1, %s725
                %s729 = scalar_lea.vmem %s698, %s728 [#allocation2]
                %s730 = sshll.u32 1, %s725
                %s731 = ssub.s32 %s730, 1
                loop: start=0, step=1, limit=1
                $region303: #{tpu_custom_call.1} parent=301 // loop_pre_header
                  _
                $region304: #{tpu_custom_call.1} parent=301 // loop_header
                  %s733 = sphi 0, %s737
                  %p734 = scmp.ge.s32.totalorder %s733, 1
                  %s738 = sphi %s727, %s727
                  %s739 = sphi %s729, %s729
                $region305: #{tpu_custom_call.1} parent=301 // loop_header_branch
                  %736 = sbr.rel (%p734) target = $region309
                $region306: #{tpu_custom_call.1} parent=301 // loop_body
                  %v740 = vld [vmem:[%s738] sm:%s731]
                  %741 = vst [vmem:[%s739] sm:%s731] %v740
                $region307: #{tpu_custom_call.1} parent=301 // loop_footer
                  %s737 = sadd.s32 1, %s733
                $region308: #{tpu_custom_call.1} parent=301 // loop_footer_branch
                  %732 = sbr.rel target = $region304
                $region309: #{tpu_custom_call.1} parent=301 // loop_exit
                  _
              $region302: #{tpu_custom_call.1} parent=286 // pred_fallthru
                _
            $region287: #{tpu_custom_call.1} parent=282 // pred_fallthru
              _
            // Predicated region
            $region288: #{tpu_custom_call.1} parent=282 // pred_check
              %p705 = pneg %p701
            $region289: #{tpu_custom_call.1} parent=282 // pred_check_branch
              %707 = sbr.rel (%p705) target = $region291
            $region290: #{tpu_custom_call.1} parent=282 // pred_region
              %s708 = sshll.u32 1, 1
              %s709 = ssub.s32 %s708, 1
              loop: start=0, step=1, limit=1
              $region292: #{tpu_custom_call.1} parent=290 // loop_pre_header
                _
              $region293: #{tpu_custom_call.1} parent=290 // loop_header
                %s711 = sphi 0, %s715
                %p712 = scmp.ge.s32.totalorder %s711, 1
                %s716 = sphi %s697, %s697
                %s717 = sphi %s698, %s698
              $region294: #{tpu_custom_call.1} parent=290 // loop_header_branch
                %714 = sbr.rel (%p712) target = $region298
              $region295: #{tpu_custom_call.1} parent=290 // loop_body
                %v718 = vld [vmem:[%s716] sm:%s709]
                %719 = vst [vmem:[%s717] sm:%s709] %v718
              $region296: #{tpu_custom_call.1} parent=290 // loop_footer
                %s715 = sadd.s32 1, %s711
              $region297: #{tpu_custom_call.1} parent=290 // loop_footer_branch
                %710 = sbr.rel target = $region293
              $region298: #{tpu_custom_call.1} parent=290 // loop_exit
                _
            $region291: #{tpu_custom_call.1} parent=282 // pred_fallthru
              _
            // Predicated region
            $region310: #{tpu_custom_call.1} parent=282 // pred_check
              _
            $region311: #{tpu_custom_call.1} parent=282 // pred_check_branch
              %744 = sbr.rel (0) target = $region313
            $region312: #{tpu_custom_call.1} parent=282 // pred_region
              %745 = vsyncadd %s699, 16
            $region313: #{tpu_custom_call.1} parent=282 // pred_fallthru
              _
          $region283: #{tpu_custom_call.1} parent=276 // pred_fallthru
            _
        $region277: #{tpu_custom_call.1} parent=31 // loop_footer
          %s655 = sadd.s32 1, %s651
        $region278: #{tpu_custom_call.1} parent=31 // loop_footer_branch
          %650 = sbr.rel target = $region274
        $region279: #{tpu_custom_call.1} parent=31 // loop_exit
          _
        %v746 = vld [vmem:[#allocation2] sm:$0xff]
        %v747 = vld [vmem:[%s187] sm:$0xff]
        %v748 = vadd.f32 %v746, %v747
        %vm749 = vcmask 261120
        %v750 = vsel %vm749, %v748, 0.0
        %751 = vadd.xlane.f32.xlu0 %v750
        %v752 = vpop.xlane.xlu0 %751
        %v753 = vrcp.pop 32.0
        %v754 = vmul.f32 %v752, %v753
        %v755 = vsub.f32 %v748, %v754
        %v756 = vmul.f32 %v755, %v755
        %v757 = vsel %vm749, %v756, 0.0
        %758 = vadd.xlane.f32.xlu0 %v757
        %v759 = vpop.xlane.xlu0 %758
        %v760 = vmul.f32 %v759, %v753
        %v761 = vadd.f32 %v760, 1e-05
        %v762 = vrsqrt.pop %v761
        %v763 = vmul.f32 %v755, %v762
        %v764 = vld [vmem:[%s3] sm:$0x1]
        %v766 = vlaneseq
        %v767 = vshrl.u32 %v766, 7
        %v768 = vsub.s32 0, %v767
        %v769 = vrot.slane %v764, %v768
        %v771 = vmul.f32 %v763, %v769
        %v772 = vld [vmem:[%s4] sm:$0x1]
        %v774 = vlaneseq
        %v775 = vshrl.u32 %v774, 7
        %v776 = vsub.s32 0, %v775
        %v777 = vrot.slane %v772, %v776
        %v779 = vadd.f32 %v771, %v777
        %780 = vst.msk [vmem:[%s183] sm:$0xff] %vm749, %v779
        %s781 = sand.u32 %s115, 1
        %s782 = scalar_lea.sflag [#allocation7], %s781
        %s783 = sand.u32 %s115, 1
        %s784 = smul.addr %s783, 8
        %s785 = scalar_lea.vmem [#allocation6], %s784
        // Predicated region
        $region314: #{tpu_custom_call.1} parent=31 // pred_check
          %p786 = pneg %p125
        $region315: #{tpu_custom_call.1} parent=31 // pred_check_branch
          %788 = sbr.rel (%p786) target = $region317
        $region316: #{tpu_custom_call.1} parent=31 // pred_region
          %s790 = ssub.s32 128, 128
          %791 = vsyncadd %s782, %s790
          %s792 = sadd.s32 %s30, %s29
          %s793 = smul.addr %s792, 128
          %s794 = scalar_lea.hbm %s5, %s793
          %s796 = sshll.u32 %s785, 4
          %s797 = int_to_ptr.vmem [resolvable:$true] %s796
          %799 = dma.vmem_to_hbm [thread:$0]  %s797, 128, %s794, %s782
        $region317: #{tpu_custom_call.1} parent=31 // pred_fallthru
          _
      $region32: #{tpu_custom_call.1} parent=5 // pred_fallthru
        _
      %p800 = scmp.le.s32.totalorder 2, %s20
      // Predicated region
      $region318: #{tpu_custom_call.1} parent=5 // pred_check
        %p801 = pneg %p800
      $region319: #{tpu_custom_call.1} parent=5 // pred_check_branch
        %803 = sbr.rel (%p801) target = $region321
      $region320: #{tpu_custom_call.1} parent=5 // pred_region
        %s804 = ssub.s32 %s20, 2
        // Predicated region
        $region322: #{tpu_custom_call.1} parent=320 // pred_check
          %p805 = pneg %p131
        $region323: #{tpu_custom_call.1} parent=320 // pred_check_branch
          %807 = sbr.rel (%p805) target = $region325
        $region324: #{tpu_custom_call.1} parent=320 // pred_region
          %s808 = sand.u32 %s116, 1
          %s809 = scalar_lea.sflag [#allocation7], %s808
          %s810 = sand.u32 %s116, 1
          %s811 = smul.addr %s810, 8
          %s812 = scalar_lea.vmem [#allocation6], %s811
          %813 = dma.done %s809, 128
        $region325: #{tpu_custom_call.1} parent=320 // pred_fallthru
          _
      $region321: #{tpu_custom_call.1} parent=5 // pred_fallthru
        _
    $region6: #{tpu_custom_call.1} parent=1 // loop_footer
      %s24 = sadd.s32 1, %s20
    $region7: #{tpu_custom_call.1} parent=1 // loop_footer_branch
      %19 = sbr.rel target = $region3
    $region8: #{tpu_custom_call.1} parent=1 // loop_exit
      _
    %814 = vsyncpa [#allocation7], 1
    %s815 = scalar_lea.sflag [#allocation7], 1
    %816 = vsyncpa %s815, 1
  %817 = vsyncmov [#allocation3]
  %s818 = vpop.sfrf %817
  %p819 = scmp.eq.s32.totalorder %s818, 0
  %p820 = pneg %p819
  %822 = shalt.err (%p820)
  %s823 = scalar_lea.sflag [#allocation3], 1
  %824 = vsyncmov %s823
  %s825 = vpop.sfrf %824
  %p826 = scmp.eq.s32.totalorder %s825, 0
  %p827 = pneg %p826
  %829 = shalt.err (%p827)
  %s830 = scalar_lea.sflag [#allocation3], 2
  %831 = vsyncmov %s830
  %s832 = vpop.sfrf %831
  %p833 = scmp.eq.s32.totalorder %s832, 0
  %p834 = pneg %p833
  %836 = shalt.err (%p834)
  %s837 = scalar_lea.sflag [#allocation3], 3
  %838 = vsyncmov %s837
  %s839 = vpop.sfrf %838
  %p840 = scmp.eq.s32.totalorder %s839, 0
  %p841 = pneg %p840
  %843 = shalt.err (%p841)
  %s844 = scalar_lea.sflag [#allocation3], 4
  %845 = vsyncmov %s844
  %s846 = vpop.sfrf %845
  %p847 = scmp.eq.s32.totalorder %s846, 0
  %p848 = pneg %p847
  %850 = shalt.err (%p848)
  %s851 = scalar_lea.sflag [#allocation3], 5
  %852 = vsyncmov %s851
  %s853 = vpop.sfrf %852
  %p854 = scmp.eq.s32.totalorder %s853, 0
  %p855 = pneg %p854
  %857 = shalt.err (%p855)
  %s858 = scalar_lea.sflag [#allocation3], 6
  %859 = vsyncmov %s858
  %s860 = vpop.sfrf %859
  %p861 = scmp.eq.s32.totalorder %s860, 0
  %p862 = pneg %p861
  %864 = shalt.err (%p862)
  %s865 = scalar_lea.sflag [#allocation3], 7
  %866 = vsyncmov %s865
  %s867 = vpop.sfrf %866
  %p868 = scmp.eq.s32.totalorder %s867, 0
  %p869 = pneg %p868
  %871 = shalt.err (%p869)

</llo_original>
